<compile_context>
chip_gen: v6e
topology: v6e:2x2x1
jax: 0.10.0
libtpu: 0.0.40
codegen_flags: <defaults>
</compile_context>

<pallas_src>
import math

import jax
import jax.numpy as jnp
from jax.experimental import pallas as pl
from jax.experimental.pallas import tpu as pltpu

_BN_EPS = 1e-5
_POOL = 3  # MaxPool1d(3): kernel=3, stride=3, floor mode


def _slab_layout(n_res_blocks, kernel_size, channels):
    """Consumption-ordered shapes of the packed weight / per-channel-vector slabs."""
    chans = list(channels) + [channels[-1]]          # mirrors ResNet.__init__
    K = kernel_size
    w_shapes = [(chans[0], K)]                       # conv_in, stored (Cout, K)
    v_lens = [chans[0], chans[0]]                    # conv_in BN gamma, beta
    for i, nb in enumerate(n_res_blocks):
        cin, cout = chans[i], chans[i + 1]
        for _ in range(nb):
            w_shapes += [(cin, K * cin), (cin, K * cin)]   # conv1, conv2 (Cout, K*Cin)
            v_lens += [cin, cin, cin, cin]                 # g1, b1, g2, b2
        if cin != cout:
            w_shapes += [(cout, cin)]                      # 1x1 projection (no bias)
            v_lens += [cout, cout]                         # proj BN gamma, beta
    w_shapes += [(2, chans[-1])]                           # fc weight (out, in)
    v_lens += [2]                                          # fc bias
    rows = max([r for r, _ in w_shapes] + v_lens)
    return chans, w_shapes, v_lens, rows


def _pack_params(params, n_res_blocks, kernel_size, channels):
    """Pack every parameter into 2 slabs (one DMA each): weights & BN/bias vectors."""
    chans, w_shapes, v_lens, rows = _slab_layout(n_res_blocks, kernel_size, channels)
    K = kernel_size

    w_list = [params['conv_in']['w'][:, 0, :]]                 # (C0, K)
    v_list = [params['conv_in']['g'], params['conv_in']['bt']]
    for i, bott in enumerate(params['bottlenecks']):
        cin = chans[i]
        for blk in bott['blocks']:
            # torch (Cout, Cin, K) -> (Cout, K*Cin) with columns ordered (k, ci)
            w_list.append(jnp.transpose(blk['w1'], (0, 2, 1)).reshape(cin, K * cin))
            v_list += [blk['g1'], blk['bt1']]
            w_list.append(jnp.transpose(blk['w2'], (0, 2, 1)).reshape(cin, K * cin))
            v_list += [blk['g2'], blk['bt2']]
        if bott['proj'] is not None:
            w_list.append(bott['proj']['w'][:, :, 0])          # (Cout, Cin)
            v_list += [bott['proj']['g'], bott['proj']['bt']]
    w_list.append(params['fc']['w'])                           # (2, C_last)
    v_list.append(params['fc']['b'])                           # (2,)

    wslab = jnp.concatenate(
        [jnp.pad(w.astype(jnp.float32), ((0, rows - w.shape[0]), (0, 0))) for w in w_list],
        axis=1)                                                # (rows, sum_cols)
    vslab = jnp.stack(
        [jnp.pad(v.astype(jnp.float32).reshape(-1), (0, rows - v.size)) for v in v_list],
        axis=1)                                                # (rows, n_vectors)
    return wslab, vslab


def _make_kernel(n_res_blocks, kernel_size, channels, n_batch, length):
    """Builds the single fused kernel for a given static architecture/config."""
    chans, w_shapes, v_lens, _ = _slab_layout(n_res_blocks, kernel_size, channels)
    K = kernel_size
    P = _POOL
    N = n_batch
    L0 = length - K + 1                  # conv_in is 'valid'
    # TODO(synk): if L0 % P != 0 the trailing (pool-discarded) positions still feed
    # the BatchNorm statistics; handle them before relaxing this assert.
    assert L0 % P == 0, "conv_in output length must be divisible by the pool size"
    Lp = L0 // P                         # length after MaxPool1d(3)
    M = Lp + (P + K - 2) // P            # columns of the residue-decomposed input

    w_offs = []
    off = 0
    for _, c in w_shapes:
        w_offs.append(off)
        off += c

    left = (K - 1) // 2
    right = K - 1 - left

    def kernel(xr_ref, w_ref, v_ref, out_ref):
        xr = xr_ref[...]                 # (N*P, M)  pool-residue-decomposed input
        wslab = w_ref[...]
        vslab = v_ref[...]
        w_it = iter(range(len(w_shapes)))
        v_it = iter(range(len(v_lens)))

        def next_w():
            i = next(w_it)
            r, c = w_shapes[i]
            return wslab[:r, w_offs[i]:w_offs[i] + c]

        def next_v():
            i = next(v_it)
            return vslab[:v_lens[i], i:i + 1]          # (C, 1) column

        def bn_scale_shift(pieces, g, b, cnt):
            # Training-mode BatchNorm1d (batch stats, biased variance), folded to a
            # per-channel scale/shift so the apply is only 2 VPU ops per element.
            inv = 1.0 / cnt
            mean = sum(jnp.sum(p, axis=1, keepdims=True) for p in pieces) * inv
            var = sum(jnp.sum((p - mean) ** 2, axis=1, keepdims=True) for p in pieces) * inv
            scale = g * jax.lax.rsqrt(var + _BN_EPS)
            return scale, b - mean * scale

        # ---- conv_in (Cin=1, VPU broadcast FMAs) fused with BN / ReLU / MaxPool(3) ----
        # Output position l = P*j + r; xr[n*P + s, m] holds x[n, P*m + s], so every
        # tap access is a contiguous lane slice.  Conv bias omitted (cancels in BN).
        w_in = next_w()                                # (C0, K)
        g0, b0 = next_v(), next_v()
        hin = []                                       # hin[n][r]: (C0, Lp)
        for n in range(N):
            per_r = []
            for r in range(P):
                acc = None
                for k in range(K):
                    t = r + k
                    row = xr[n * P + (t % P):n * P + (t % P) + 1,
                             (t // P):(t // P) + Lp]   # (1, Lp)
                    term = w_in[:, k:k + 1] * row      # (C0, Lp) broadcast FMA
                    acc = term if acc is None else acc + term
                per_r.append(acc)
            hin.append(per_r)
        sc, sh = bn_scale_shift([p for per_r in hin for p in per_r], g0, b0, N * P * Lp)
        pooled = []
        for n in range(N):
            m = None
            for r in range(P):
                y = hin[n][r] * sc + sh
                m = y if m is None else jnp.maximum(m, y)
            pooled.append(jnp.maximum(m, 0.0))         # ReLU commutes with the max
        h = jnp.concatenate(pooled, axis=1)            # (C0, N*Lp): channels x batch*length

        # ---- residual bottlenecks -----------------------------------------------
        def conv_same_reflect(h, w, cin):
            # 'same' conv, stride 1, reflect padding; ONE MXU matmul per layer:
            # the K shifted views are stacked along the contraction dimension.
            segs = []
            for n in range(N):
                seg = h[:, n * Lp:(n + 1) * Lp]
                parts = ([seg[:, i:i + 1] for i in range(left, 0, -1)] + [seg] +
                         [seg[:, Lp - 2 - j:Lp - 1 - j] for j in range(right)])
                segs.append(jnp.concatenate(parts, axis=1) if (left or right) else seg)
            taps = [jnp.concatenate([sp[:, k:k + Lp] for sp in segs], axis=1)
                    for k in range(K)]                  # each (cin, N*Lp)
            op = jnp.concatenate(taps, axis=0)          # (K*cin, N*Lp)
            return jnp.dot(w, op, preferred_element_type=jnp.float32)   # (cout, N*Lp)

        cnt = N * Lp
        for i, nb in enumerate(n_res_blocks):
            cin, cout = chans[i], chans[i + 1]
            for _ in range(nb):
                w1 = next_w(); g1 = next_v(); b1 = next_v()
                w2 = next_w(); g2 = next_v(); b2 = next_v()
                res = h
                y = conv_same_reflect(h, w1, cin)
                sc, sh = bn_scale_shift([y], g1, b1, cnt)
                y = jnp.maximum(y * sc + sh, 0.0)
                y = conv_same_reflect(y, w2, cin)
                sc, sh = bn_scale_shift([y], g2, b2, cnt)
                h = jnp.maximum(y * sc + sh + res, 0.0)
            if cin != cout:
                wp = next_w(); gp = next_v(); bp = next_v()
                y = jnp.dot(wp, h, preferred_element_type=jnp.float32)  # 1x1 conv, bias=False
                sc, sh = bn_scale_shift([y], gp, bp, cnt)
                h = y * sc + sh

        # ---- AvgPool1d(1) == identity; mean over length; Linear(C_last, 2) -------
        wfc = next_w()                                 # (2, C_last)
        bfc = next_v()                                 # (2, 1)
        pooled_b = jnp.concatenate(
            [jnp.mean(h[:, n * Lp:(n + 1) * Lp], axis=1, keepdims=True) for n in range(N)],
            axis=1)                                    # (C_last, N)
        out_t = jnp.dot(wfc, pooled_b, preferred_element_type=jnp.float32) + bfc
        out_ref[...] = out_t.astype(out_ref.dtype)     # (2, N); transposed in the wrapper

    return kernel


def resnet_forward(params, x_ncl, n_res_blocks, kernel_size, channels):
    """x_ncl: PyTorch-style (N, 1, L) input.  Returns (N, 2) logits."""
    N, _, L_in = x_ncl.shape
    K = kernel_size
    P = _POOL
    L0 = L_in - K + 1
    Lp = L0 // P
    M = Lp + (P + K - 2) // P

    # Build the kernel first (validates the static config).
    kernel = _make_kernel(tuple(n_res_blocks), kernel_size, tuple(channels), N, L_in)

    # One-time layout glue (plain XLA, outside the kernel):
    #   (N, 1, L) -> lane-dense (N, L) -> pool-residue decomposition (N*P, M)
    #   with xr[n*P + s, m] = x[n, P*m + s]; this turns MaxPool1d(3) and the
    #   strided conv_in accesses into contiguous lane slices inside the kernel.
    x2 = x_ncl[:, 0, :].astype(jnp.float32)
    xr = jnp.pad(x2, ((0, 0), (0, P * M - L_in)))
    xr = jnp.transpose(xr.reshape(N, M, P), (0, 2, 1)).reshape(N * P, M)

    wslab, vslab = _pack_params(params, n_res_blocks, kernel_size, channels)

    vmem = pl.BlockSpec(memory_space=pltpu.MemorySpace.VMEM)
    out_t = pl.pallas_call(
        kernel,
        out_shape=jax.ShapeDtypeStruct((2, N), jnp.float32),
        in_specs=[vmem, vmem, vmem],
        out_specs=vmem,
    )(xr, wslab, vslab)
    return out_t.T                                     # (N, 2)


def init_params(key, n_res_blocks, kernel_size, channels):
    chans = list(channels) + [channels[-1]]            # mirrors ResNet.__init__
    keys = iter(jax.random.split(key, 256))

    def nxt():
        return next(keys)

    def conv_weight(cin, cout, k):
        s = 1.0 / math.sqrt(cin * k)
        return s * jax.random.normal(nxt(), (cout, cin, k), jnp.float32)  # torch layout

    def bn_p(c):
        g = 1.0 + 0.05 * jax.random.normal(nxt(), (c,), jnp.float32)
        b = 0.05 * jax.random.normal(nxt(), (c,), jnp.float32)
        return g, b

    # NOTE: conv biases are intentionally not created -- any per-channel bias in
    # front of a training-mode BatchNorm is exactly cancelled by the mean
    # subtraction, so the forward output is identical with or without them.
    p = {'conv_in': {}}
    p['conv_in']['w'] = conv_weight(1, chans[0], kernel_size)
    p['conv_in']['g'], p['conv_in']['bt'] = bn_p(chans[0])

    p['bottlenecks'] = []
    for i, nb in enumerate(n_res_blocks):
        cin, cout = chans[i], chans[i + 1]
        blocks = []
        for _ in range(nb):
            blk = {'w1': conv_weight(cin, cin, kernel_size)}
            blk['g1'], blk['bt1'] = bn_p(cin)
            blk['w2'] = conv_weight(cin, cin, kernel_size)
            blk['g2'], blk['bt2'] = bn_p(cin)
            blocks.append(blk)
        proj = None
        if cin != cout:
            proj = {'w': conv_weight(cin, cout, 1)}     # 1x1 conv, bias=False
            proj['g'], proj['bt'] = bn_p(cout)
        p['bottlenecks'].append({'blocks': blocks, 'proj': proj})

    c_last = chans[-1]
    s = 1.0 / math.sqrt(c_last)
    p['fc'] = {'w': s * jax.random.normal(nxt(), (2, c_last), jnp.float32),  # torch (out,in)
               'b': s * jax.random.normal(nxt(), (2,), jnp.float32)}
    return p


if __name__ == "__main__":
    key = jax.random.PRNGKey(0)
    kp, kx = jax.random.split(key)

    n_res_blocks = [1, 1]
    kernel_size = 3
    channels = [8, 16]

    params = init_params(kp, n_res_blocks, kernel_size, channels)

    # PyTorch-style input: (batch=2, in_channels=1, length=50) NCL.
    x = jax.random.normal(kx, (2, 1, 50), jnp.float32)

    fwd = jax.jit(lambda p, xx: resnet_forward(p, xx, n_res_blocks,
                                               kernel_size, channels))
    out = jax.block_until_ready(fwd(params, x))
    assert out.shape == (2, 2) and out.dtype == jnp.float32
    print("KERNEL_OK")
</pallas_src>

<mosaic_0001>
module attributes {stable_mosaic.version = 11 : i64} {
  func.func @kernel(%arg0: memref<6x17xf32, #tpu.memory_space<vmem>>, %arg1: memref<16x171xf32, #tpu.memory_space<vmem>>, %arg2: memref<16x13xf32, #tpu.memory_space<vmem>>, %arg3: memref<2x2xf32, #tpu.memory_space<vmem>>) attributes {dimension_semantics = [], scalar_prefetch = 0 : i64, scratch_operands = 0 : i64, tpu.core_type = #tpu.core_type<tc>} {
    %c0 = arith.constant 0 : index
    %c0_0 = arith.constant 0 : index
    %0 = vector.load %arg0[%c0, %c0_0] : memref<6x17xf32, #tpu.memory_space<vmem>>, vector<6x17xf32>
    %c0_1 = arith.constant 0 : index
    %c0_2 = arith.constant 0 : index
    %1 = vector.load %arg1[%c0_1, %c0_2] : memref<16x171xf32, #tpu.memory_space<vmem>>, vector<16x171xf32>
    %c0_3 = arith.constant 0 : index
    %c0_4 = arith.constant 0 : index
    %2 = vector.load %arg2[%c0_3, %c0_4] : memref<16x13xf32, #tpu.memory_space<vmem>>, vector<16x13xf32>
    %3 = vector.extract_strided_slice %1 {offsets = [0, 0], sizes = [8, 3], strides = [1, 1]} : vector<16x171xf32> to vector<8x3xf32>
    %4 = vector.extract_strided_slice %2 {offsets = [0, 0], sizes = [8, 1], strides = [1, 1]} : vector<16x13xf32> to vector<8x1xf32>
    %5 = vector.extract_strided_slice %2 {offsets = [0, 1], sizes = [8, 1], strides = [1, 1]} : vector<16x13xf32> to vector<8x1xf32>
    %6 = vector.extract_strided_slice %0 {offsets = [0, 0], sizes = [1, 16], strides = [1, 1]} : vector<6x17xf32> to vector<1x16xf32>
    %7 = vector.extract_strided_slice %3 {offsets = [0, 0], sizes = [8, 1], strides = [1, 1]} : vector<8x3xf32> to vector<8x1xf32>
    %8 = vector.broadcast %7 : vector<8x1xf32> to vector<8x16xf32>
    %9 = vector.broadcast %6 : vector<1x16xf32> to vector<8x16xf32>
    %10 = arith.mulf %8, %9 : vector<8x16xf32>
    %11 = vector.extract_strided_slice %0 {offsets = [1, 0], sizes = [1, 16], strides = [1, 1]} : vector<6x17xf32> to vector<1x16xf32>
    %12 = vector.extract_strided_slice %3 {offsets = [0, 1], sizes = [8, 1], strides = [1, 1]} : vector<8x3xf32> to vector<8x1xf32>
    %13 = vector.broadcast %12 : vector<8x1xf32> to vector<8x16xf32>
    %14 = vector.broadcast %11 : vector<1x16xf32> to vector<8x16xf32>
    %15 = arith.mulf %13, %14 : vector<8x16xf32>
    %16 = arith.addf %10, %15 : vector<8x16xf32>
    %17 = vector.extract_strided_slice %0 {offsets = [2, 0], sizes = [1, 16], strides = [1, 1]} : vector<6x17xf32> to vector<1x16xf32>
    %18 = vector.extract_strided_slice %3 {offsets = [0, 2], sizes = [8, 1], strides = [1, 1]} : vector<8x3xf32> to vector<8x1xf32>
    %19 = vector.broadcast %18 : vector<8x1xf32> to vector<8x16xf32>
    %20 = vector.broadcast %17 : vector<1x16xf32> to vector<8x16xf32>
    %21 = arith.mulf %19, %20 : vector<8x16xf32>
    %22 = arith.addf %16, %21 : vector<8x16xf32>
    %23 = vector.extract_strided_slice %0 {offsets = [1, 0], sizes = [1, 16], strides = [1, 1]} : vector<6x17xf32> to vector<1x16xf32>
    %24 = vector.extract_strided_slice %3 {offsets = [0, 0], sizes = [8, 1], strides = [1, 1]} : vector<8x3xf32> to vector<8x1xf32>
    %25 = vector.broadcast %24 : vector<8x1xf32> to vector<8x16xf32>
    %26 = vector.broadcast %23 : vector<1x16xf32> to vector<8x16xf32>
    %27 = arith.mulf %25, %26 : vector<8x16xf32>
    %28 = vector.extract_strided_slice %0 {offsets = [2, 0], sizes = [1, 16], strides = [1, 1]} : vector<6x17xf32> to vector<1x16xf32>
    %29 = vector.extract_strided_slice %3 {offsets = [0, 1], sizes = [8, 1], strides = [1, 1]} : vector<8x3xf32> to vector<8x1xf32>
    %30 = vector.broadcast %29 : vector<8x1xf32> to vector<8x16xf32>
    %31 = vector.broadcast %28 : vector<1x16xf32> to vector<8x16xf32>
    %32 = arith.mulf %30, %31 : vector<8x16xf32>
    %33 = arith.addf %27, %32 : vector<8x16xf32>
    %34 = vector.extract_strided_slice %0 {offsets = [0, 1], sizes = [1, 16], strides = [1, 1]} : vector<6x17xf32> to vector<1x16xf32>
    %35 = vector.extract_strided_slice %3 {offsets = [0, 2], sizes = [8, 1], strides = [1, 1]} : vector<8x3xf32> to vector<8x1xf32>
    %36 = vector.broadcast %35 : vector<8x1xf32> to vector<8x16xf32>
    %37 = vector.broadcast %34 : vector<1x16xf32> to vector<8x16xf32>
    %38 = arith.mulf %36, %37 : vector<8x16xf32>
    %39 = arith.addf %33, %38 : vector<8x16xf32>
    %40 = vector.extract_strided_slice %0 {offsets = [2, 0], sizes = [1, 16], strides = [1, 1]} : vector<6x17xf32> to vector<1x16xf32>
    %41 = vector.extract_strided_slice %3 {offsets = [0, 0], sizes = [8, 1], strides = [1, 1]} : vector<8x3xf32> to vector<8x1xf32>
    %42 = vector.broadcast %41 : vector<8x1xf32> to vector<8x16xf32>
    %43 = vector.broadcast %40 : vector<1x16xf32> to vector<8x16xf32>
    %44 = arith.mulf %42, %43 : vector<8x16xf32>
    %45 = vector.extract_strided_slice %0 {offsets = [0, 1], sizes = [1, 16], strides = [1, 1]} : vector<6x17xf32> to vector<1x16xf32>
    %46 = vector.extract_strided_slice %3 {offsets = [0, 1], sizes = [8, 1], strides = [1, 1]} : vector<8x3xf32> to vector<8x1xf32>
    %47 = vector.broadcast %46 : vector<8x1xf32> to vector<8x16xf32>
    %48 = vector.broadcast %45 : vector<1x16xf32> to vector<8x16xf32>
    %49 = arith.mulf %47, %48 : vector<8x16xf32>
    %50 = arith.addf %44, %49 : vector<8x16xf32>
    %51 = vector.extract_strided_slice %0 {offsets = [1, 1], sizes = [1, 16], strides = [1, 1]} : vector<6x17xf32> to vector<1x16xf32>
    %52 = vector.extract_strided_slice %3 {offsets = [0, 2], sizes = [8, 1], strides = [1, 1]} : vector<8x3xf32> to vector<8x1xf32>
    %53 = vector.broadcast %52 : vector<8x1xf32> to vector<8x16xf32>
    %54 = vector.broadcast %51 : vector<1x16xf32> to vector<8x16xf32>
    %55 = arith.mulf %53, %54 : vector<8x16xf32>
    %56 = arith.addf %50, %55 : vector<8x16xf32>
    %57 = vector.extract_strided_slice %0 {offsets = [3, 0], sizes = [1, 16], strides = [1, 1]} : vector<6x17xf32> to vector<1x16xf32>
    %58 = vector.extract_strided_slice %3 {offsets = [0, 0], sizes = [8, 1], strides = [1, 1]} : vector<8x3xf32> to vector<8x1xf32>
    %59 = vector.broadcast %58 : vector<8x1xf32> to vector<8x16xf32>
    %60 = vector.broadcast %57 : vector<1x16xf32> to vector<8x16xf32>
    %61 = arith.mulf %59, %60 : vector<8x16xf32>
    %62 = vector.extract_strided_slice %0 {offsets = [4, 0], sizes = [1, 16], strides = [1, 1]} : vector<6x17xf32> to vector<1x16xf32>
    %63 = vector.extract_strided_slice %3 {offsets = [0, 1], sizes = [8, 1], strides = [1, 1]} : vector<8x3xf32> to vector<8x1xf32>
    %64 = vector.broadcast %63 : vector<8x1xf32> to vector<8x16xf32>
    %65 = vector.broadcast %62 : vector<1x16xf32> to vector<8x16xf32>
    %66 = arith.mulf %64, %65 : vector<8x16xf32>
    %67 = arith.addf %61, %66 : vector<8x16xf32>
    %68 = vector.extract_strided_slice %0 {offsets = [5, 0], sizes = [1, 16], strides = [1, 1]} : vector<6x17xf32> to vector<1x16xf32>
    %69 = vector.extract_strided_slice %3 {offsets = [0, 2], sizes = [8, 1], strides = [1, 1]} : vector<8x3xf32> to vector<8x1xf32>
    %70 = vector.broadcast %69 : vector<8x1xf32> to vector<8x16xf32>
    %71 = vector.broadcast %68 : vector<1x16xf32> to vector<8x16xf32>
    %72 = arith.mulf %70, %71 : vector<8x16xf32>
    %73 = arith.addf %67, %72 : vector<8x16xf32>
    %74 = vector.extract_strided_slice %0 {offsets = [4, 0], sizes = [1, 16], strides = [1, 1]} : vector<6x17xf32> to vector<1x16xf32>
    %75 = vector.extract_strided_slice %3 {offsets = [0, 0], sizes = [8, 1], strides = [1, 1]} : vector<8x3xf32> to vector<8x1xf32>
    %76 = vector.broadcast %75 : vector<8x1xf32> to vector<8x16xf32>
    %77 = vector.broadcast %74 : vector<1x16xf32> to vector<8x16xf32>
    %78 = arith.mulf %76, %77 : vector<8x16xf32>
    %79 = vector.extract_strided_slice %0 {offsets = [5, 0], sizes = [1, 16], strides = [1, 1]} : vector<6x17xf32> to vector<1x16xf32>
    %80 = vector.extract_strided_slice %3 {offsets = [0, 1], sizes = [8, 1], strides = [1, 1]} : vector<8x3xf32> to vector<8x1xf32>
    %81 = vector.broadcast %80 : vector<8x1xf32> to vector<8x16xf32>
    %82 = vector.broadcast %79 : vector<1x16xf32> to vector<8x16xf32>
    %83 = arith.mulf %81, %82 : vector<8x16xf32>
    %84 = arith.addf %78, %83 : vector<8x16xf32>
    %85 = vector.extract_strided_slice %0 {offsets = [3, 1], sizes = [1, 16], strides = [1, 1]} : vector<6x17xf32> to vector<1x16xf32>
    %86 = vector.extract_strided_slice %3 {offsets = [0, 2], sizes = [8, 1], strides = [1, 1]} : vector<8x3xf32> to vector<8x1xf32>
    %87 = vector.broadcast %86 : vector<8x1xf32> to vector<8x16xf32>
    %88 = vector.broadcast %85 : vector<1x16xf32> to vector<8x16xf32>
    %89 = arith.mulf %87, %88 : vector<8x16xf32>
    %90 = arith.addf %84, %89 : vector<8x16xf32>
    %91 = vector.extract_strided_slice %0 {offsets = [5, 0], sizes = [1, 16], strides = [1, 1]} : vector<6x17xf32> to vector<1x16xf32>
    %92 = vector.extract_strided_slice %3 {offsets = [0, 0], sizes = [8, 1], strides = [1, 1]} : vector<8x3xf32> to vector<8x1xf32>
    %93 = vector.broadcast %92 : vector<8x1xf32> to vector<8x16xf32>
    %94 = vector.broadcast %91 : vector<1x16xf32> to vector<8x16xf32>
    %95 = arith.mulf %93, %94 : vector<8x16xf32>
    %96 = vector.extract_strided_slice %0 {offsets = [3, 1], sizes = [1, 16], strides = [1, 1]} : vector<6x17xf32> to vector<1x16xf32>
    %97 = vector.extract_strided_slice %3 {offsets = [0, 1], sizes = [8, 1], strides = [1, 1]} : vector<8x3xf32> to vector<8x1xf32>
    %98 = vector.broadcast %97 : vector<8x1xf32> to vector<8x16xf32>
    %99 = vector.broadcast %96 : vector<1x16xf32> to vector<8x16xf32>
    %100 = arith.mulf %98, %99 : vector<8x16xf32>
    %101 = arith.addf %95, %100 : vector<8x16xf32>
    %102 = vector.extract_strided_slice %0 {offsets = [4, 1], sizes = [1, 16], strides = [1, 1]} : vector<6x17xf32> to vector<1x16xf32>
    %103 = vector.extract_strided_slice %3 {offsets = [0, 2], sizes = [8, 1], strides = [1, 1]} : vector<8x3xf32> to vector<8x1xf32>
    %104 = vector.broadcast %103 : vector<8x1xf32> to vector<8x16xf32>
    %105 = vector.broadcast %102 : vector<1x16xf32> to vector<8x16xf32>
    %106 = arith.mulf %104, %105 : vector<8x16xf32>
    %107 = arith.addf %101, %106 : vector<8x16xf32>
    %cst = arith.constant dense<0.000000e+00> : vector<8xf32>
    %108 = vector.multi_reduction <add>, %22, %cst [1] : vector<8x16xf32> to vector<8xf32>
    %109 = vector.shape_cast %108 : vector<8xf32> to vector<8x1xf32>
    %cst_5 = arith.constant 0.000000e+00 : f32
    %110 = vector.broadcast %cst_5 : f32 to vector<8x1xf32>
    %111 = arith.addf %110, %109 : vector<8x1xf32>
    %cst_6 = arith.constant dense<0.000000e+00> : vector<8xf32>
    %112 = vector.multi_reduction <add>, %39, %cst_6 [1] : vector<8x16xf32> to vector<8xf32>
    %113 = vector.shape_cast %112 : vector<8xf32> to vector<8x1xf32>
    %114 = arith.addf %111, %113 : vector<8x1xf32>
    %cst_7 = arith.constant dense<0.000000e+00> : vector<8xf32>
    %115 = vector.multi_reduction <add>, %56, %cst_7 [1] : vector<8x16xf32> to vector<8xf32>
    %116 = vector.shape_cast %115 : vector<8xf32> to vector<8x1xf32>
    %117 = arith.addf %114, %116 : vector<8x1xf32>
    %cst_8 = arith.constant dense<0.000000e+00> : vector<8xf32>
    %118 = vector.multi_reduction <add>, %73, %cst_8 [1] : vector<8x16xf32> to vector<8xf32>
    %119 = vector.shape_cast %118 : vector<8xf32> to vector<8x1xf32>
    %120 = arith.addf %117, %119 : vector<8x1xf32>
    %cst_9 = arith.constant dense<0.000000e+00> : vector<8xf32>
    %121 = vector.multi_reduction <add>, %90, %cst_9 [1] : vector<8x16xf32> to vector<8xf32>
    %122 = vector.shape_cast %121 : vector<8xf32> to vector<8x1xf32>
    %123 = arith.addf %120, %122 : vector<8x1xf32>
    %cst_10 = arith.constant dense<0.000000e+00> : vector<8xf32>
    %124 = vector.multi_reduction <add>, %107, %cst_10 [1] : vector<8x16xf32> to vector<8xf32>
    %125 = vector.shape_cast %124 : vector<8xf32> to vector<8x1xf32>
    %126 = arith.addf %123, %125 : vector<8x1xf32>
    %cst_11 = arith.constant 0.010416667 : f32
    %127 = vector.broadcast %cst_11 : f32 to vector<8x1xf32>
    %128 = arith.mulf %126, %127 : vector<8x1xf32>
    %129 = vector.broadcast %128 : vector<8x1xf32> to vector<8x16xf32>
    %130 = arith.subf %22, %129 : vector<8x16xf32>
    %131 = arith.mulf %130, %130 : vector<8x16xf32>
    %cst_12 = arith.constant dense<0.000000e+00> : vector<8xf32>
    %132 = vector.multi_reduction <add>, %131, %cst_12 [1] : vector<8x16xf32> to vector<8xf32>
    %133 = vector.shape_cast %132 : vector<8xf32> to vector<8x1xf32>
    %cst_13 = arith.constant 0.000000e+00 : f32
    %134 = vector.broadcast %cst_13 : f32 to vector<8x1xf32>
    %135 = arith.addf %134, %133 : vector<8x1xf32>
    %136 = vector.broadcast %128 : vector<8x1xf32> to vector<8x16xf32>
    %137 = arith.subf %39, %136 : vector<8x16xf32>
    %138 = arith.mulf %137, %137 : vector<8x16xf32>
    %cst_14 = arith.constant dense<0.000000e+00> : vector<8xf32>
    %139 = vector.multi_reduction <add>, %138, %cst_14 [1] : vector<8x16xf32> to vector<8xf32>
    %140 = vector.shape_cast %139 : vector<8xf32> to vector<8x1xf32>
    %141 = arith.addf %135, %140 : vector<8x1xf32>
    %142 = vector.broadcast %128 : vector<8x1xf32> to vector<8x16xf32>
    %143 = arith.subf %56, %142 : vector<8x16xf32>
    %144 = arith.mulf %143, %143 : vector<8x16xf32>
    %cst_15 = arith.constant dense<0.000000e+00> : vector<8xf32>
    %145 = vector.multi_reduction <add>, %144, %cst_15 [1] : vector<8x16xf32> to vector<8xf32>
    %146 = vector.shape_cast %145 : vector<8xf32> to vector<8x1xf32>
    %147 = arith.addf %141, %146 : vector<8x1xf32>
    %148 = vector.broadcast %128 : vector<8x1xf32> to vector<8x16xf32>
    %149 = arith.subf %73, %148 : vector<8x16xf32>
    %150 = arith.mulf %149, %149 : vector<8x16xf32>
    %cst_16 = arith.constant dense<0.000000e+00> : vector<8xf32>
    %151 = vector.multi_reduction <add>, %150, %cst_16 [1] : vector<8x16xf32> to vector<8xf32>
    %152 = vector.shape_cast %151 : vector<8xf32> to vector<8x1xf32>
    %153 = arith.addf %147, %152 : vector<8x1xf32>
    %154 = vector.broadcast %128 : vector<8x1xf32> to vector<8x16xf32>
    %155 = arith.subf %90, %154 : vector<8x16xf32>
    %156 = arith.mulf %155, %155 : vector<8x16xf32>
    %cst_17 = arith.constant dense<0.000000e+00> : vector<8xf32>
    %157 = vector.multi_reduction <add>, %156, %cst_17 [1] : vector<8x16xf32> to vector<8xf32>
    %158 = vector.shape_cast %157 : vector<8xf32> to vector<8x1xf32>
    %159 = arith.addf %153, %158 : vector<8x1xf32>
    %160 = vector.broadcast %128 : vector<8x1xf32> to vector<8x16xf32>
    %161 = arith.subf %107, %160 : vector<8x16xf32>
    %162 = arith.mulf %161, %161 : vector<8x16xf32>
    %cst_18 = arith.constant dense<0.000000e+00> : vector<8xf32>
    %163 = vector.multi_reduction <add>, %162, %cst_18 [1] : vector<8x16xf32> to vector<8xf32>
    %164 = vector.shape_cast %163 : vector<8xf32> to vector<8x1xf32>
    %165 = arith.addf %159, %164 : vector<8x1xf32>
    %cst_19 = arith.constant 0.010416667 : f32
    %166 = vector.broadcast %cst_19 : f32 to vector<8x1xf32>
    %167 = arith.mulf %165, %166 : vector<8x1xf32>
    %cst_20 = arith.constant 9.99999974E-6 : f32
    %168 = vector.broadcast %cst_20 : f32 to vector<8x1xf32>
    %169 = arith.addf %167, %168 : vector<8x1xf32>
    %170 = math.rsqrt %169 : vector<8x1xf32>
    %171 = arith.mulf %4, %170 : vector<8x1xf32>
    %172 = arith.mulf %128, %171 : vector<8x1xf32>
    %173 = arith.subf %5, %172 : vector<8x1xf32>
    %174 = vector.broadcast %171 : vector<8x1xf32> to vector<8x16xf32>
    %175 = arith.mulf %22, %174 : vector<8x16xf32>
    %176 = vector.broadcast %173 : vector<8x1xf32> to vector<8x16xf32>
    %177 = arith.addf %175, %176 : vector<8x16xf32>
    %178 = vector.broadcast %171 : vector<8x1xf32> to vector<8x16xf32>
    %179 = arith.mulf %39, %178 : vector<8x16xf32>
    %180 = vector.broadcast %173 : vector<8x1xf32> to vector<8x16xf32>
    %181 = arith.addf %179, %180 : vector<8x16xf32>
    %182 = arith.maximumf %177, %181 : vector<8x16xf32>
    %183 = vector.broadcast %171 : vector<8x1xf32> to vector<8x16xf32>
    %184 = arith.mulf %56, %183 : vector<8x16xf32>
    %185 = vector.broadcast %173 : vector<8x1xf32> to vector<8x16xf32>
    %186 = arith.addf %184, %185 : vector<8x16xf32>
    %187 = arith.maximumf %182, %186 : vector<8x16xf32>
    %cst_21 = arith.constant 0.000000e+00 : f32
    %188 = vector.broadcast %cst_21 : f32 to vector<8x16xf32>
    %189 = arith.maximumf %187, %188 : vector<8x16xf32>
    %190 = vector.broadcast %171 : vector<8x1xf32> to vector<8x16xf32>
    %191 = arith.mulf %73, %190 : vector<8x16xf32>
    %192 = vector.broadcast %173 : vector<8x1xf32> to vector<8x16xf32>
    %193 = arith.addf %191, %192 : vector<8x16xf32>
    %194 = vector.broadcast %171 : vector<8x1xf32> to vector<8x16xf32>
    %195 = arith.mulf %90, %194 : vector<8x16xf32>
    %196 = vector.broadcast %173 : vector<8x1xf32> to vector<8x16xf32>
    %197 = arith.addf %195, %196 : vector<8x16xf32>
    %198 = arith.maximumf %193, %197 : vector<8x16xf32>
    %199 = vector.broadcast %171 : vector<8x1xf32> to vector<8x16xf32>
    %200 = arith.mulf %107, %199 : vector<8x16xf32>
    %201 = vector.broadcast %173 : vector<8x1xf32> to vector<8x16xf32>
    %202 = arith.addf %200, %201 : vector<8x16xf32>
    %203 = arith.maximumf %198, %202 : vector<8x16xf32>
    %cst_22 = arith.constant 0.000000e+00 : f32
    %204 = vector.broadcast %cst_22 : f32 to vector<8x16xf32>
    %205 = arith.maximumf %203, %204 : vector<8x16xf32>
    %206 = tpu.concatenate %189, %205 in 1 : vector<8x16xf32>, vector<8x16xf32> -> vector<8x32xf32>
    %207 = vector.extract_strided_slice %1 {offsets = [0, 3], sizes = [8, 24], strides = [1, 1]} : vector<16x171xf32> to vector<8x24xf32>
    %208 = vector.extract_strided_slice %2 {offsets = [0, 2], sizes = [8, 1], strides = [1, 1]} : vector<16x13xf32> to vector<8x1xf32>
    %209 = vector.extract_strided_slice %2 {offsets = [0, 3], sizes = [8, 1], strides = [1, 1]} : vector<16x13xf32> to vector<8x1xf32>
    %210 = vector.extract_strided_slice %1 {offsets = [0, 27], sizes = [8, 24], strides = [1, 1]} : vector<16x171xf32> to vector<8x24xf32>
    %211 = vector.extract_strided_slice %2 {offsets = [0, 4], sizes = [8, 1], strides = [1, 1]} : vector<16x13xf32> to vector<8x1xf32>
    %212 = vector.extract_strided_slice %2 {offsets = [0, 5], sizes = [8, 1], strides = [1, 1]} : vector<16x13xf32> to vector<8x1xf32>
    %213 = vector.extract_strided_slice %206 {offsets = [0, 0], sizes = [8, 16], strides = [1, 1]} : vector<8x32xf32> to vector<8x16xf32>
    %214 = vector.extract_strided_slice %213 {offsets = [0, 1], sizes = [8, 1], strides = [1, 1]} : vector<8x16xf32> to vector<8x1xf32>
    %215 = vector.extract_strided_slice %213 {offsets = [0, 14], sizes = [8, 1], strides = [1, 1]} : vector<8x16xf32> to vector<8x1xf32>
    %216 = tpu.concatenate %214, %213, %215 in 1 : vector<8x1xf32>, vector<8x16xf32>, vector<8x1xf32> -> vector<8x18xf32>
    %217 = vector.extract_strided_slice %206 {offsets = [0, 16], sizes = [8, 16], strides = [1, 1]} : vector<8x32xf32> to vector<8x16xf32>
    %218 = vector.extract_strided_slice %217 {offsets = [0, 1], sizes = [8, 1], strides = [1, 1]} : vector<8x16xf32> to vector<8x1xf32>
    %219 = vector.extract_strided_slice %217 {offsets = [0, 14], sizes = [8, 1], strides = [1, 1]} : vector<8x16xf32> to vector<8x1xf32>
    %220 = tpu.concatenate %218, %217, %219 in 1 : vector<8x1xf32>, vector<8x16xf32>, vector<8x1xf32> -> vector<8x18xf32>
    %221 = vector.extract_strided_slice %216 {offsets = [0, 0], sizes = [8, 16], strides = [1, 1]} : vector<8x18xf32> to vector<8x16xf32>
    %222 = vector.extract_strided_slice %220 {offsets = [0, 0], sizes = [8, 16], strides = [1, 1]} : vector<8x18xf32> to vector<8x16xf32>
    %223 = tpu.concatenate %221, %222 in 1 : vector<8x16xf32>, vector<8x16xf32> -> vector<8x32xf32>
    %224 = vector.extract_strided_slice %216 {offsets = [0, 1], sizes = [8, 16], strides = [1, 1]} : vector<8x18xf32> to vector<8x16xf32>
    %225 = vector.extract_strided_slice %220 {offsets = [0, 1], sizes = [8, 16], strides = [1, 1]} : vector<8x18xf32> to vector<8x16xf32>
    %226 = tpu.concatenate %224, %225 in 1 : vector<8x16xf32>, vector<8x16xf32> -> vector<8x32xf32>
    %227 = vector.extract_strided_slice %216 {offsets = [0, 2], sizes = [8, 16], strides = [1, 1]} : vector<8x18xf32> to vector<8x16xf32>
    %228 = vector.extract_strided_slice %220 {offsets = [0, 2], sizes = [8, 16], strides = [1, 1]} : vector<8x18xf32> to vector<8x16xf32>
    %229 = tpu.concatenate %227, %228 in 1 : vector<8x16xf32>, vector<8x16xf32> -> vector<8x32xf32>
    %230 = tpu.concatenate %223, %226, %229 in 0 : vector<8x32xf32>, vector<8x32xf32>, vector<8x32xf32> -> vector<24x32xf32>
    %cst_23 = arith.constant dense<0.000000e+00> : vector<8x32xf32>
    %231 = tpu.matmul %207, %230, %cst_23 {dimension_numbers = #tpu.dot_dimension_numbers<[1], [0], [0], [1], [0, 0, 1, 1], [], []>} : vector<8x24xf32>, vector<24x32xf32>, vector<8x32xf32> -> vector<8x32xf32>
    %cst_24 = arith.constant dense<0.000000e+00> : vector<8xf32>
    %232 = vector.multi_reduction <add>, %231, %cst_24 [1] : vector<8x32xf32> to vector<8xf32>
    %233 = vector.shape_cast %232 : vector<8xf32> to vector<8x1xf32>
    %cst_25 = arith.constant 0.000000e+00 : f32
    %234 = vector.broadcast %cst_25 : f32 to vector<8x1xf32>
    %235 = arith.addf %234, %233 : vector<8x1xf32>
    %cst_26 = arith.constant 3.125000e-02 : f32
    %236 = vector.broadcast %cst_26 : f32 to vector<8x1xf32>
    %237 = arith.mulf %235, %236 : vector<8x1xf32>
    %238 = vector.broadcast %237 : vector<8x1xf32> to vector<8x32xf32>
    %239 = arith.subf %231, %238 : vector<8x32xf32>
    %240 = arith.mulf %239, %239 : vector<8x32xf32>
    %cst_27 = arith.constant dense<0.000000e+00> : vector<8xf32>
    %241 = vector.multi_reduction <add>, %240, %cst_27 [1] : vector<8x32xf32> to vector<8xf32>
    %242 = vector.shape_cast %241 : vector<8xf32> to vector<8x1xf32>
    %cst_28 = arith.constant 0.000000e+00 : f32
    %243 = vector.broadcast %cst_28 : f32 to vector<8x1xf32>
    %244 = arith.addf %243, %242 : vector<8x1xf32>
    %cst_29 = arith.constant 3.125000e-02 : f32
    %245 = vector.broadcast %cst_29 : f32 to vector<8x1xf32>
    %246 = arith.mulf %244, %245 : vector<8x1xf32>
    %cst_30 = arith.constant 9.99999974E-6 : f32
    %247 = vector.broadcast %cst_30 : f32 to vector<8x1xf32>
    %248 = arith.addf %246, %247 : vector<8x1xf32>
    %249 = math.rsqrt %248 : vector<8x1xf32>
    %250 = arith.mulf %208, %249 : vector<8x1xf32>
    %251 = arith.mulf %237, %250 : vector<8x1xf32>
    %252 = arith.subf %209, %251 : vector<8x1xf32>
    %253 = vector.broadcast %250 : vector<8x1xf32> to vector<8x32xf32>
    %254 = arith.mulf %231, %253 : vector<8x32xf32>
    %255 = vector.broadcast %252 : vector<8x1xf32> to vector<8x32xf32>
    %256 = arith.addf %254, %255 : vector<8x32xf32>
    %cst_31 = arith.constant 0.000000e+00 : f32
    %257 = vector.broadcast %cst_31 : f32 to vector<8x32xf32>
    %258 = arith.maximumf %256, %257 : vector<8x32xf32>
    %259 = vector.extract_strided_slice %258 {offsets = [0, 0], sizes = [8, 16], strides = [1, 1]} : vector<8x32xf32> to vector<8x16xf32>
    %260 = vector.extract_strided_slice %259 {offsets = [0, 1], sizes = [8, 1], strides = [1, 1]} : vector<8x16xf32> to vector<8x1xf32>
    %261 = vector.extract_strided_slice %259 {offsets = [0, 14], sizes = [8, 1], strides = [1, 1]} : vector<8x16xf32> to vector<8x1xf32>
    %262 = tpu.concatenate %260, %259, %261 in 1 : vector<8x1xf32>, vector<8x16xf32>, vector<8x1xf32> -> vector<8x18xf32>
    %263 = vector.extract_strided_slice %258 {offsets = [0, 16], sizes = [8, 16], strides = [1, 1]} : vector<8x32xf32> to vector<8x16xf32>
    %264 = vector.extract_strided_slice %263 {offsets = [0, 1], sizes = [8, 1], strides = [1, 1]} : vector<8x16xf32> to vector<8x1xf32>
    %265 = vector.extract_strided_slice %263 {offsets = [0, 14], sizes = [8, 1], strides = [1, 1]} : vector<8x16xf32> to vector<8x1xf32>
    %266 = tpu.concatenate %264, %263, %265 in 1 : vector<8x1xf32>, vector<8x16xf32>, vector<8x1xf32> -> vector<8x18xf32>
    %267 = vector.extract_strided_slice %262 {offsets = [0, 0], sizes = [8, 16], strides = [1, 1]} : vector<8x18xf32> to vector<8x16xf32>
    %268 = vector.extract_strided_slice %266 {offsets = [0, 0], sizes = [8, 16], strides = [1, 1]} : vector<8x18xf32> to vector<8x16xf32>
    %269 = tpu.concatenate %267, %268 in 1 : vector<8x16xf32>, vector<8x16xf32> -> vector<8x32xf32>
    %270 = vector.extract_strided_slice %262 {offsets = [0, 1], sizes = [8, 16], strides = [1, 1]} : vector<8x18xf32> to vector<8x16xf32>
    %271 = vector.extract_strided_slice %266 {offsets = [0, 1], sizes = [8, 16], strides = [1, 1]} : vector<8x18xf32> to vector<8x16xf32>
    %272 = tpu.concatenate %270, %271 in 1 : vector<8x16xf32>, vector<8x16xf32> -> vector<8x32xf32>
    %273 = vector.extract_strided_slice %262 {offsets = [0, 2], sizes = [8, 16], strides = [1, 1]} : vector<8x18xf32> to vector<8x16xf32>
    %274 = vector.extract_strided_slice %266 {offsets = [0, 2], sizes = [8, 16], strides = [1, 1]} : vector<8x18xf32> to vector<8x16xf32>
    %275 = tpu.concatenate %273, %274 in 1 : vector<8x16xf32>, vector<8x16xf32> -> vector<8x32xf32>
    %276 = tpu.concatenate %269, %272, %275 in 0 : vector<8x32xf32>, vector<8x32xf32>, vector<8x32xf32> -> vector<24x32xf32>
    %cst_32 = arith.constant dense<0.000000e+00> : vector<8x32xf32>
    %277 = tpu.matmul %210, %276, %cst_32 {dimension_numbers = #tpu.dot_dimension_numbers<[1], [0], [0], [1], [0, 0, 1, 1], [], []>} : vector<8x24xf32>, vector<24x32xf32>, vector<8x32xf32> -> vector<8x32xf32>
    %cst_33 = arith.constant dense<0.000000e+00> : vector<8xf32>
    %278 = vector.multi_reduction <add>, %277, %cst_33 [1] : vector<8x32xf32> to vector<8xf32>
    %279 = vector.shape_cast %278 : vector<8xf32> to vector<8x1xf32>
    %cst_34 = arith.constant 0.000000e+00 : f32
    %280 = vector.broadcast %cst_34 : f32 to vector<8x1xf32>
    %281 = arith.addf %280, %279 : vector<8x1xf32>
    %cst_35 = arith.constant 3.125000e-02 : f32
    %282 = vector.broadcast %cst_35 : f32 to vector<8x1xf32>
    %283 = arith.mulf %281, %282 : vector<8x1xf32>
    %284 = vector.broadcast %283 : vector<8x1xf32> to vector<8x32xf32>
    %285 = arith.subf %277, %284 : vector<8x32xf32>
    %286 = arith.mulf %285, %285 : vector<8x32xf32>
    %cst_36 = arith.constant dense<0.000000e+00> : vector<8xf32>
    %287 = vector.multi_reduction <add>, %286, %cst_36 [1] : vector<8x32xf32> to vector<8xf32>
    %288 = vector.shape_cast %287 : vector<8xf32> to vector<8x1xf32>
    %cst_37 = arith.constant 0.000000e+00 : f32
    %289 = vector.broadcast %cst_37 : f32 to vector<8x1xf32>
    %290 = arith.addf %289, %288 : vector<8x1xf32>
    %cst_38 = arith.constant 3.125000e-02 : f32
    %291 = vector.broadcast %cst_38 : f32 to vector<8x1xf32>
    %292 = arith.mulf %290, %291 : vector<8x1xf32>
    %cst_39 = arith.constant 9.99999974E-6 : f32
    %293 = vector.broadcast %cst_39 : f32 to vector<8x1xf32>
    %294 = arith.addf %292, %293 : vector<8x1xf32>
    %295 = math.rsqrt %294 : vector<8x1xf32>
    %296 = arith.mulf %211, %295 : vector<8x1xf32>
    %297 = arith.mulf %283, %296 : vector<8x1xf32>
    %298 = arith.subf %212, %297 : vector<8x1xf32>
    %299 = vector.broadcast %296 : vector<8x1xf32> to vector<8x32xf32>
    %300 = arith.mulf %277, %299 : vector<8x32xf32>
    %301 = vector.broadcast %298 : vector<8x1xf32> to vector<8x32xf32>
    %302 = arith.addf %300, %301 : vector<8x32xf32>
    %303 = arith.addf %302, %206 : vector<8x32xf32>
    %cst_40 = arith.constant 0.000000e+00 : f32
    %304 = vector.broadcast %cst_40 : f32 to vector<8x32xf32>
    %305 = arith.maximumf %303, %304 : vector<8x32xf32>
    %306 = vector.extract_strided_slice %1 {offsets = [0, 51], sizes = [16, 8], strides = [1, 1]} : vector<16x171xf32> to vector<16x8xf32>
    %307 = vector.extract_strided_slice %2 {offsets = [0, 6], sizes = [16, 1], strides = [1, 1]} : vector<16x13xf32> to vector<16x1xf32>
    %308 = vector.extract_strided_slice %2 {offsets = [0, 7], sizes = [16, 1], strides = [1, 1]} : vector<16x13xf32> to vector<16x1xf32>
    %cst_41 = arith.constant dense<0.000000e+00> : vector<16x32xf32>
    %309 = tpu.matmul %306, %305, %cst_41 {dimension_numbers = #tpu.dot_dimension_numbers<[1], [0], [0], [1], [0, 0, 1, 1], [], []>} : vector<16x8xf32>, vector<8x32xf32>, vector<16x32xf32> -> vector<16x32xf32>
    %cst_42 = arith.constant dense<0.000000e+00> : vector<16xf32>
    %310 = vector.multi_reduction <add>, %309, %cst_42 [1] : vector<16x32xf32> to vector<16xf32>
    %311 = vector.shape_cast %310 : vector<16xf32> to vector<16x1xf32>
    %cst_43 = arith.constant 0.000000e+00 : f32
    %312 = vector.broadcast %cst_43 : f32 to vector<16x1xf32>
    %313 = arith.addf %312, %311 : vector<16x1xf32>
    %cst_44 = arith.constant 3.125000e-02 : f32
    %314 = vector.broadcast %cst_44 : f32 to vector<16x1xf32>
    %315 = arith.mulf %313, %314 : vector<16x1xf32>
    %316 = vector.broadcast %315 : vector<16x1xf32> to vector<16x32xf32>
    %317 = arith.subf %309, %316 : vector<16x32xf32>
    %318 = arith.mulf %317, %317 : vector<16x32xf32>
    %cst_45 = arith.constant dense<0.000000e+00> : vector<16xf32>
    %319 = vector.multi_reduction <add>, %318, %cst_45 [1] : vector<16x32xf32> to vector<16xf32>
    %320 = vector.shape_cast %319 : vector<16xf32> to vector<16x1xf32>
    %cst_46 = arith.constant 0.000000e+00 : f32
    %321 = vector.broadcast %cst_46 : f32 to vector<16x1xf32>
    %322 = arith.addf %321, %320 : vector<16x1xf32>
    %cst_47 = arith.constant 3.125000e-02 : f32
    %323 = vector.broadcast %cst_47 : f32 to vector<16x1xf32>
    %324 = arith.mulf %322, %323 : vector<16x1xf32>
    %cst_48 = arith.constant 9.99999974E-6 : f32
    %325 = vector.broadcast %cst_48 : f32 to vector<16x1xf32>
    %326 = arith.addf %324, %325 : vector<16x1xf32>
    %327 = math.rsqrt %326 : vector<16x1xf32>
    %328 = arith.mulf %307, %327 : vector<16x1xf32>
    %329 = arith.mulf %315, %328 : vector<16x1xf32>
    %330 = arith.subf %308, %329 : vector<16x1xf32>
    %331 = vector.broadcast %328 : vector<16x1xf32> to vector<16x32xf32>
    %332 = arith.mulf %309, %331 : vector<16x32xf32>
    %333 = vector.broadcast %330 : vector<16x1xf32> to vector<16x32xf32>
    %334 = arith.addf %332, %333 : vector<16x32xf32>
    %335 = vector.extract_strided_slice %1 {offsets = [0, 59], sizes = [16, 48], strides = [1, 1]} : vector<16x171xf32> to vector<16x48xf32>
    %336 = vector.extract_strided_slice %2 {offsets = [0, 8], sizes = [16, 1], strides = [1, 1]} : vector<16x13xf32> to vector<16x1xf32>
    %337 = vector.extract_strided_slice %2 {offsets = [0, 9], sizes = [16, 1], strides = [1, 1]} : vector<16x13xf32> to vector<16x1xf32>
    %338 = vector.extract_strided_slice %1 {offsets = [0, 107], sizes = [16, 48], strides = [1, 1]} : vector<16x171xf32> to vector<16x48xf32>
    %339 = vector.extract_strided_slice %2 {offsets = [0, 10], sizes = [16, 1], strides = [1, 1]} : vector<16x13xf32> to vector<16x1xf32>
    %340 = vector.extract_strided_slice %2 {offsets = [0, 11], sizes = [16, 1], strides = [1, 1]} : vector<16x13xf32> to vector<16x1xf32>
    %341 = vector.extract_strided_slice %334 {offsets = [0, 0], sizes = [16, 16], strides = [1, 1]} : vector<16x32xf32> to vector<16x16xf32>
    %342 = vector.extract_strided_slice %341 {offsets = [0, 1], sizes = [16, 1], strides = [1, 1]} : vector<16x16xf32> to vector<16x1xf32>
    %343 = vector.extract_strided_slice %341 {offsets = [0, 14], sizes = [16, 1], strides = [1, 1]} : vector<16x16xf32> to vector<16x1xf32>
    %344 = tpu.concatenate %342, %341, %343 in 1 : vector<16x1xf32>, vector<16x16xf32>, vector<16x1xf32> -> vector<16x18xf32>
    %345 = vector.extract_strided_slice %334 {offsets = [0, 16], sizes = [16, 16], strides = [1, 1]} : vector<16x32xf32> to vector<16x16xf32>
    %346 = vector.extract_strided_slice %345 {offsets = [0, 1], sizes = [16, 1], strides = [1, 1]} : vector<16x16xf32> to vector<16x1xf32>
    %347 = vector.extract_strided_slice %345 {offsets = [0, 14], sizes = [16, 1], strides = [1, 1]} : vector<16x16xf32> to vector<16x1xf32>
    %348 = tpu.concatenate %346, %345, %347 in 1 : vector<16x1xf32>, vector<16x16xf32>, vector<16x1xf32> -> vector<16x18xf32>
    %349 = vector.extract_strided_slice %344 {offsets = [0, 0], sizes = [16, 16], strides = [1, 1]} : vector<16x18xf32> to vector<16x16xf32>
    %350 = vector.extract_strided_slice %348 {offsets = [0, 0], sizes = [16, 16], strides = [1, 1]} : vector<16x18xf32> to vector<16x16xf32>
    %351 = tpu.concatenate %349, %350 in 1 : vector<16x16xf32>, vector<16x16xf32> -> vector<16x32xf32>
    %352 = vector.extract_strided_slice %344 {offsets = [0, 1], sizes = [16, 16], strides = [1, 1]} : vector<16x18xf32> to vector<16x16xf32>
    %353 = vector.extract_strided_slice %348 {offsets = [0, 1], sizes = [16, 16], strides = [1, 1]} : vector<16x18xf32> to vector<16x16xf32>
    %354 = tpu.concatenate %352, %353 in 1 : vector<16x16xf32>, vector<16x16xf32> -> vector<16x32xf32>
    %355 = vector.extract_strided_slice %344 {offsets = [0, 2], sizes = [16, 16], strides = [1, 1]} : vector<16x18xf32> to vector<16x16xf32>
    %356 = vector.extract_strided_slice %348 {offsets = [0, 2], sizes = [16, 16], strides = [1, 1]} : vector<16x18xf32> to vector<16x16xf32>
    %357 = tpu.concatenate %355, %356 in 1 : vector<16x16xf32>, vector<16x16xf32> -> vector<16x32xf32>
    %358 = tpu.concatenate %351, %354, %357 in 0 : vector<16x32xf32>, vector<16x32xf32>, vector<16x32xf32> -> vector<48x32xf32>
    %cst_49 = arith.constant dense<0.000000e+00> : vector<16x32xf32>
    %359 = tpu.matmul %335, %358, %cst_49 {dimension_numbers = #tpu.dot_dimension_numbers<[1], [0], [0], [1], [0, 0, 1, 1], [], []>} : vector<16x48xf32>, vector<48x32xf32>, vector<16x32xf32> -> vector<16x32xf32>
    %cst_50 = arith.constant dense<0.000000e+00> : vector<16xf32>
    %360 = vector.multi_reduction <add>, %359, %cst_50 [1] : vector<16x32xf32> to vector<16xf32>
    %361 = vector.shape_cast %360 : vector<16xf32> to vector<16x1xf32>
    %cst_51 = arith.constant 0.000000e+00 : f32
    %362 = vector.broadcast %cst_51 : f32 to vector<16x1xf32>
    %363 = arith.addf %362, %361 : vector<16x1xf32>
    %cst_52 = arith.constant 3.125000e-02 : f32
    %364 = vector.broadcast %cst_52 : f32 to vector<16x1xf32>
    %365 = arith.mulf %363, %364 : vector<16x1xf32>
    %366 = vector.broadcast %365 : vector<16x1xf32> to vector<16x32xf32>
    %367 = arith.subf %359, %366 : vector<16x32xf32>
    %368 = arith.mulf %367, %367 : vector<16x32xf32>
    %cst_53 = arith.constant dense<0.000000e+00> : vector<16xf32>
    %369 = vector.multi_reduction <add>, %368, %cst_53 [1] : vector<16x32xf32> to vector<16xf32>
    %370 = vector.shape_cast %369 : vector<16xf32> to vector<16x1xf32>
    %cst_54 = arith.constant 0.000000e+00 : f32
    %371 = vector.broadcast %cst_54 : f32 to vector<16x1xf32>
    %372 = arith.addf %371, %370 : vector<16x1xf32>
    %cst_55 = arith.constant 3.125000e-02 : f32
    %373 = vector.broadcast %cst_55 : f32 to vector<16x1xf32>
    %374 = arith.mulf %372, %373 : vector<16x1xf32>
    %cst_56 = arith.constant 9.99999974E-6 : f32
    %375 = vector.broadcast %cst_56 : f32 to vector<16x1xf32>
    %376 = arith.addf %374, %375 : vector<16x1xf32>
    %377 = math.rsqrt %376 : vector<16x1xf32>
    %378 = arith.mulf %336, %377 : vector<16x1xf32>
    %379 = arith.mulf %365, %378 : vector<16x1xf32>
    %380 = arith.subf %337, %379 : vector<16x1xf32>
    %381 = vector.broadcast %378 : vector<16x1xf32> to vector<16x32xf32>
    %382 = arith.mulf %359, %381 : vector<16x32xf32>
    %383 = vector.broadcast %380 : vector<16x1xf32> to vector<16x32xf32>
    %384 = arith.addf %382, %383 : vector<16x32xf32>
    %cst_57 = arith.constant 0.000000e+00 : f32
    %385 = vector.broadcast %cst_57 : f32 to vector<16x32xf32>
    %386 = arith.maximumf %384, %385 : vector<16x32xf32>
    %387 = vector.extract_strided_slice %386 {offsets = [0, 0], sizes = [16, 16], strides = [1, 1]} : vector<16x32xf32> to vector<16x16xf32>
    %388 = vector.extract_strided_slice %387 {offsets = [0, 1], sizes = [16, 1], strides = [1, 1]} : vector<16x16xf32> to vector<16x1xf32>
    %389 = vector.extract_strided_slice %387 {offsets = [0, 14], sizes = [16, 1], strides = [1, 1]} : vector<16x16xf32> to vector<16x1xf32>
    %390 = tpu.concatenate %388, %387, %389 in 1 : vector<16x1xf32>, vector<16x16xf32>, vector<16x1xf32> -> vector<16x18xf32>
    %391 = vector.extract_strided_slice %386 {offsets = [0, 16], sizes = [16, 16], strides = [1, 1]} : vector<16x32xf32> to vector<16x16xf32>
    %392 = vector.extract_strided_slice %391 {offsets = [0, 1], sizes = [16, 1], strides = [1, 1]} : vector<16x16xf32> to vector<16x1xf32>
    %393 = vector.extract_strided_slice %391 {offsets = [0, 14], sizes = [16, 1], strides = [1, 1]} : vector<16x16xf32> to vector<16x1xf32>
    %394 = tpu.concatenate %392, %391, %393 in 1 : vector<16x1xf32>, vector<16x16xf32>, vector<16x1xf32> -> vector<16x18xf32>
    %395 = vector.extract_strided_slice %390 {offsets = [0, 0], sizes = [16, 16], strides = [1, 1]} : vector<16x18xf32> to vector<16x16xf32>
    %396 = vector.extract_strided_slice %394 {offsets = [0, 0], sizes = [16, 16], strides = [1, 1]} : vector<16x18xf32> to vector<16x16xf32>
    %397 = tpu.concatenate %395, %396 in 1 : vector<16x16xf32>, vector<16x16xf32> -> vector<16x32xf32>
    %398 = vector.extract_strided_slice %390 {offsets = [0, 1], sizes = [16, 16], strides = [1, 1]} : vector<16x18xf32> to vector<16x16xf32>
    %399 = vector.extract_strided_slice %394 {offsets = [0, 1], sizes = [16, 16], strides = [1, 1]} : vector<16x18xf32> to vector<16x16xf32>
    %400 = tpu.concatenate %398, %399 in 1 : vector<16x16xf32>, vector<16x16xf32> -> vector<16x32xf32>
    %401 = vector.extract_strided_slice %390 {offsets = [0, 2], sizes = [16, 16], strides = [1, 1]} : vector<16x18xf32> to vector<16x16xf32>
    %402 = vector.extract_strided_slice %394 {offsets = [0, 2], sizes = [16, 16], strides = [1, 1]} : vector<16x18xf32> to vector<16x16xf32>
    %403 = tpu.concatenate %401, %402 in 1 : vector<16x16xf32>, vector<16x16xf32> -> vector<16x32xf32>
    %404 = tpu.concatenate %397, %400, %403 in 0 : vector<16x32xf32>, vector<16x32xf32>, vector<16x32xf32> -> vector<48x32xf32>
    %cst_58 = arith.constant dense<0.000000e+00> : vector<16x32xf32>
    %405 = tpu.matmul %338, %404, %cst_58 {dimension_numbers = #tpu.dot_dimension_numbers<[1], [0], [0], [1], [0, 0, 1, 1], [], []>} : vector<16x48xf32>, vector<48x32xf32>, vector<16x32xf32> -> vector<16x32xf32>
    %cst_59 = arith.constant dense<0.000000e+00> : vector<16xf32>
    %406 = vector.multi_reduction <add>, %405, %cst_59 [1] : vector<16x32xf32> to vector<16xf32>
    %407 = vector.shape_cast %406 : vector<16xf32> to vector<16x1xf32>
    %cst_60 = arith.constant 0.000000e+00 : f32
    %408 = vector.broadcast %cst_60 : f32 to vector<16x1xf32>
    %409 = arith.addf %408, %407 : vector<16x1xf32>
    %cst_61 = arith.constant 3.125000e-02 : f32
    %410 = vector.broadcast %cst_61 : f32 to vector<16x1xf32>
    %411 = arith.mulf %409, %410 : vector<16x1xf32>
    %412 = vector.broadcast %411 : vector<16x1xf32> to vector<16x32xf32>
    %413 = arith.subf %405, %412 : vector<16x32xf32>
    %414 = arith.mulf %413, %413 : vector<16x32xf32>
    %cst_62 = arith.constant dense<0.000000e+00> : vector<16xf32>
    %415 = vector.multi_reduction <add>, %414, %cst_62 [1] : vector<16x32xf32> to vector<16xf32>
    %416 = vector.shape_cast %415 : vector<16xf32> to vector<16x1xf32>
    %cst_63 = arith.constant 0.000000e+00 : f32
    %417 = vector.broadcast %cst_63 : f32 to vector<16x1xf32>
    %418 = arith.addf %417, %416 : vector<16x1xf32>
    %cst_64 = arith.constant 3.125000e-02 : f32
    %419 = vector.broadcast %cst_64 : f32 to vector<16x1xf32>
    %420 = arith.mulf %418, %419 : vector<16x1xf32>
    %cst_65 = arith.constant 9.99999974E-6 : f32
    %421 = vector.broadcast %cst_65 : f32 to vector<16x1xf32>
    %422 = arith.addf %420, %421 : vector<16x1xf32>
    %423 = math.rsqrt %422 : vector<16x1xf32>
    %424 = arith.mulf %339, %423 : vector<16x1xf32>
    %425 = arith.mulf %411, %424 : vector<16x1xf32>
    %426 = arith.subf %340, %425 : vector<16x1xf32>
    %427 = vector.broadcast %424 : vector<16x1xf32> to vector<16x32xf32>
    %428 = arith.mulf %405, %427 : vector<16x32xf32>
    %429 = vector.broadcast %426 : vector<16x1xf32> to vector<16x32xf32>
    %430 = arith.addf %428, %429 : vector<16x32xf32>
    %431 = arith.addf %430, %334 : vector<16x32xf32>
    %cst_66 = arith.constant 0.000000e+00 : f32
    %432 = vector.broadcast %cst_66 : f32 to vector<16x32xf32>
    %433 = arith.maximumf %431, %432 : vector<16x32xf32>
    %434 = vector.extract_strided_slice %1 {offsets = [0, 155], sizes = [2, 16], strides = [1, 1]} : vector<16x171xf32> to vector<2x16xf32>
    %435 = vector.extract_strided_slice %2 {offsets = [0, 12], sizes = [2, 1], strides = [1, 1]} : vector<16x13xf32> to vector<2x1xf32>
    %436 = vector.extract_strided_slice %433 {offsets = [0, 0], sizes = [16, 16], strides = [1, 1]} : vector<16x32xf32> to vector<16x16xf32>
    %cst_67 = arith.constant dense<0.000000e+00> : vector<16xf32>
    %437 = vector.multi_reduction <add>, %436, %cst_67 [1] : vector<16x16xf32> to vector<16xf32>
    %438 = vector.shape_cast %437 : vector<16xf32> to vector<16x1xf32>
    %cst_68 = arith.constant 1.600000e+01 : f32
    %439 = vector.broadcast %cst_68 : f32 to vector<16x1xf32>
    %440 = arith.divf %438, %439 : vector<16x1xf32>
    %441 = vector.extract_strided_slice %433 {offsets = [0, 16], sizes = [16, 16], strides = [1, 1]} : vector<16x32xf32> to vector<16x16xf32>
    %cst_69 = arith.constant dense<0.000000e+00> : vector<16xf32>
    %442 = vector.multi_reduction <add>, %441, %cst_69 [1] : vector<16x16xf32> to vector<16xf32>
    %443 = vector.shape_cast %442 : vector<16xf32> to vector<16x1xf32>
    %cst_70 = arith.constant 1.600000e+01 : f32
    %444 = vector.broadcast %cst_70 : f32 to vector<16x1xf32>
    %445 = arith.divf %443, %444 : vector<16x1xf32>
    %446 = tpu.concatenate %440, %445 in 1 : vector<16x1xf32>, vector<16x1xf32> -> vector<16x2xf32>
    %cst_71 = arith.constant dense<0.000000e+00> : vector<2x2xf32>
    %447 = tpu.matmul %434, %446, %cst_71 {dimension_numbers = #tpu.dot_dimension_numbers<[1], [0], [0], [1], [0, 0, 1, 1], [], []>} : vector<2x16xf32>, vector<16x2xf32>, vector<2x2xf32> -> vector<2x2xf32>
    %448 = vector.broadcast %435 : vector<2x1xf32> to vector<2x2xf32>
    %449 = arith.addf %447, %448 : vector<2x2xf32>
    %c0_72 = arith.constant 0 : index
    %c0_73 = arith.constant 0 : index
    %450 = vector.load %arg3[%c0_72, %c0_73] : memref<2x2xf32, #tpu.memory_space<vmem>>, vector<2x2xf32>
    tpu.vector_store %arg3[%c0_72, %c0_73], %449 {strides = array<i32>} : memref<2x2xf32, #tpu.memory_space<vmem>>, vector<2x2xf32>,
    return
  }
}

</mosaic_0001>

<llo_original>
// kernel: _lambda_.1
$region0: #{_lambda_.1}
  #allocation0 [shape = 'u32[]', space=smem, size = 0x4, offset = 0x4, fixed_abs, tag = 'smem constant byte address 0x4 - core index']
  #allocation1 [shape = 'u32[144,128]{1,0:T(1,128)}', space=vmem, size = 0x12000, scoped, tag = 'internal scratch']
  %s0 = inlined_call_operand.vmem [shape: f32[6,17], index: 0, kind: input, shape index: {}]
  %s1 = inlined_call_operand.vmem [shape: f32[16,171], index: 1, kind: input, shape index: {}]
  %s2 = inlined_call_operand.vmem [shape: f32[16,13], index: 2, kind: input, shape index: {}]
  %s3 = inlined_call_operand.vmem [shape: f32[2,2], index: 3, kind: output, shape index: {}]
  %s4 = sld [smem:[#allocation0]]
  $region22: #{_lambda_.1} parent=0
    _
  %s6 = ssub.s32 1, %s4
  %s7 = scalar_select 0, %s6, %s4
  // Predicated region
  $region2: #{_lambda_.1} parent=0 // pred_check
    _
  $region3: #{_lambda_.1} parent=0 // pred_check_branch
    %9 = sbr.rel (0) target = $region5
  $region4: #{_lambda_.1} parent=0 // pred_region
    _
  $region5: #{_lambda_.1} parent=0 // pred_fallthru
    _
  // Predicated region
  $region6: #{_lambda_.1} parent=0 // pred_check
    _
  $region7: #{_lambda_.1} parent=0 // pred_check_branch
    %11 = sbr.rel (0) target = $region9
  $region8: #{_lambda_.1} parent=0 // pred_region
    _
  $region9: #{_lambda_.1} parent=0 // pred_fallthru
    _
  // Predicated region
  $region10: #{_lambda_.1} parent=0 // pred_check
    _
  $region11: #{_lambda_.1} parent=0 // pred_check_branch
    %13 = sbr.rel (0) target = $region13
  $region12: #{_lambda_.1} parent=0 // pred_region
    _
  $region13: #{_lambda_.1} parent=0 // pred_fallthru
    _
  %v14 = vld [vmem:[%s0] sm:$0x3f]
  %v15 = vld [vmem:[%s1] sm:$0xff]
  %v16 = vld [vmem:[%s1 + $0x8] sm:$0xff]
  %v17 = vld [vmem:[%s1 + $0x10] sm:$0xff]
  %v18 = vld [vmem:[%s1 + $0x18] sm:$0xff]
  %v19 = vld [vmem:[%s2] sm:$0xff]
  %v20 = vld [vmem:[%s2 + $0x8] sm:$0xff]
  %22 = vset.pattern.permute.xlu0 0
  %23 = vperm.xlu0 %22, %v15
  %v24 = vpop.permute.xlu0 %23
  %v26 = vlaneseq
  %v27 = vshrl.u32 %v26, 7
  %v28 = vsub.s32 0, %v27
  %v29 = vrot.slane %v14, %v28
  %v30 = vmul.f32 %v24, %v29
  %31 = vset.pattern.permute.xlu0 1
  %32 = vperm.xlu0 %31, %v15
  %v33 = vpop.permute.xlu0 %32
  %v35 = vlaneseq
  %v36 = vshrl.u32 %v35, 7
  %v37 = vsub.s32 1, %v36
  %v38 = vrot.slane %v14, %v37
  %v39 = vmul.f32 %v33, %v38
  %v40 = vadd.f32 %v30, %v39
  %41 = vset.pattern.permute.xlu0 2
  %42 = vperm.xlu0 %41, %v15
  %v43 = vpop.permute.xlu0 %42
  %v45 = vlaneseq
  %v46 = vshrl.u32 %v45, 7
  %v47 = vsub.s32 2, %v46
  %v48 = vrot.slane %v14, %v47
  %v49 = vmul.f32 %v43, %v48
  %v50 = vadd.f32 %v40, %v49
  %v51 = vmul.f32 %v24, %v38
  %v52 = vmul.f32 %v33, %v48
  %v53 = vadd.f32 %v51, %v52
  %v54 = vmul.f32 %v43, %v29
  %56 = vrot.lane.b32.xlu0 %v54, 127
  %v57 = vpop.permute.xlu0 %56
  %v59 = vadd.f32 %v53, %v57
  %v60 = vmul.f32 %v24, %v48
  %v61 = vmul.f32 %v33, %v29
  %63 = vrot.lane.b32.xlu0 %v61, 127
  %v64 = vpop.permute.xlu0 %63
  %v66 = vadd.f32 %v60, %v64
  %v67 = vmul.f32 %v43, %v38
  %69 = vrot.lane.b32.xlu0 %v67, 127
  %v70 = vpop.permute.xlu0 %69
  %v72 = vadd.f32 %v66, %v70
  %v73 = vlaneseq
  %v74 = vshrl.u32 %v73, 7
  %v75 = vsub.s32 3, %v74
  %v76 = vrot.slane %v14, %v75
  %v77 = vmul.f32 %v24, %v76
  %v78 = vlaneseq
  %v79 = vshrl.u32 %v78, 7
  %v80 = vsub.s32 4, %v79
  %v81 = vrot.slane %v14, %v80
  %v82 = vmul.f32 %v33, %v81
  %v83 = vadd.f32 %v77, %v82
  %v84 = vlaneseq
  %v85 = vshrl.u32 %v84, 7
  %v86 = vsub.s32 5, %v85
  %v87 = vrot.slane %v14, %v86
  %v88 = vmul.f32 %v43, %v87
  %v89 = vadd.f32 %v83, %v88
  %v90 = vmul.f32 %v24, %v81
  %v91 = vmul.f32 %v33, %v87
  %v92 = vadd.f32 %v90, %v91
  %v93 = vmul.f32 %v43, %v76
  %95 = vrot.lane.b32.xlu0 %v93, 127
  %v96 = vpop.permute.xlu0 %95
  %v98 = vadd.f32 %v92, %v96
  %v99 = vmul.f32 %v24, %v87
  %v100 = vmul.f32 %v33, %v76
  %102 = vrot.lane.b32.xlu0 %v100, 127
  %v103 = vpop.permute.xlu0 %102
  %v105 = vadd.f32 %v99, %v103
  %v106 = vmul.f32 %v43, %v81
  %108 = vrot.lane.b32.xlu0 %v106, 127
  %v109 = vpop.permute.xlu0 %108
  %v111 = vadd.f32 %v105, %v109
  %vm112 = vcmask 130048
  %v113 = vsel %vm112, %v50, 0.0
  %114 = vadd.xlane.f32.xlu0 %v113
  %v115 = vpop.xlane.xlu0 %114
  %v116 = vadd.f32 %v115, 0.0
  %v117 = vsel %vm112, %v59, 0.0
  %118 = vadd.xlane.f32.xlu0 %v117
  %v119 = vpop.xlane.xlu0 %118
  %v120 = vadd.f32 %v116, %v119
  %v121 = vsel %vm112, %v72, 0.0
  %122 = vadd.xlane.f32.xlu0 %v121
  %v123 = vpop.xlane.xlu0 %122
  %v124 = vadd.f32 %v120, %v123
  %v125 = vsel %vm112, %v89, 0.0
  %126 = vadd.xlane.f32.xlu0 %v125
  %v127 = vpop.xlane.xlu0 %126
  %v128 = vadd.f32 %v124, %v127
  %v129 = vsel %vm112, %v98, 0.0
  %130 = vadd.xlane.f32.xlu0 %v129
  %v131 = vpop.xlane.xlu0 %130
  %v132 = vadd.f32 %v128, %v131
  %v133 = vsel %vm112, %v111, 0.0
  %134 = vadd.xlane.f32.xlu0 %v133
  %v135 = vpop.xlane.xlu0 %134
  %v136 = vadd.f32 %v132, %v135
  %v137 = vmul.f32 %v136, 0.010416667
  %v138 = vsub.f32 %v50, %v137
  %v139 = vmul.f32 %v138, %v138
  %v140 = vsel %vm112, %v139, 0.0
  %141 = vadd.xlane.f32.xlu0 %v140
  %v142 = vpop.xlane.xlu0 %141
  %v143 = vadd.f32 %v142, 0.0
  %v144 = vsub.f32 %v59, %v137
  %v145 = vmul.f32 %v144, %v144
  %v146 = vsel %vm112, %v145, 0.0
  %147 = vadd.xlane.f32.xlu0 %v146
  %v148 = vpop.xlane.xlu0 %147
  %v149 = vadd.f32 %v143, %v148
  %v150 = vsub.f32 %v72, %v137
  %v151 = vmul.f32 %v150, %v150
  %v152 = vsel %vm112, %v151, 0.0
  %153 = vadd.xlane.f32.xlu0 %v152
  %v154 = vpop.xlane.xlu0 %153
  %v155 = vadd.f32 %v149, %v154
  %v156 = vsub.f32 %v89, %v137
  %v157 = vmul.f32 %v156, %v156
  %v158 = vsel %vm112, %v157, 0.0
  %159 = vadd.xlane.f32.xlu0 %v158
  %v160 = vpop.xlane.xlu0 %159
  %v161 = vadd.f32 %v155, %v160
  %v162 = vsub.f32 %v98, %v137
  %v163 = vmul.f32 %v162, %v162
  %v164 = vsel %vm112, %v163, 0.0
  %165 = vadd.xlane.f32.xlu0 %v164
  %v166 = vpop.xlane.xlu0 %165
  %v167 = vadd.f32 %v161, %v166
  %v168 = vsub.f32 %v111, %v137
  %v169 = vmul.f32 %v168, %v168
  %v170 = vsel %vm112, %v169, 0.0
  %171 = vadd.xlane.f32.xlu0 %v170
  %v172 = vpop.xlane.xlu0 %171
  %v173 = vadd.f32 %v167, %v172
  %v174 = vmul.f32 %v173, 0.010416667
  %v175 = vadd.f32 %v174, 1e-05
  %v176 = vrsqrt.pop %v175
  %v177 = vmul.f32 %v19, %v176
  %v178 = vmul.f32 %v137, %v177
  %180 = vrot.lane.b32.xlu0 %v178, 1
  %v181 = vpop.permute.xlu0 %180
  %v183 = vsub.f32 %v19, %v181
  %185 = vset.pattern.permute.xlu0 0
  %186 = vperm.xlu0 %185, %v177
  %v187 = vpop.permute.xlu0 %186
  %v189 = vmul.f32 %v50, %v187
  %191 = vset.pattern.permute.xlu0 1
  %192 = vperm.xlu0 %191, %v183
  %v193 = vpop.permute.xlu0 %192
  %v195 = vadd.f32 %v189, %v193
  %v196 = vmul.f32 %v59, %v187
  %v197 = vadd.f32 %v196, %v193
  %v198 = vmax.f32 %v195, %v197
  %v199 = vmul.f32 %v72, %v187
  %v200 = vadd.f32 %v199, %v193
  %v201 = vmax.f32 %v198, %v200
  %v202 = vmax.f32 %v201, 0.0
  %v203 = vmul.f32 %v89, %v187
  %v204 = vadd.f32 %v203, %v193
  %v205 = vmul.f32 %v98, %v187
  %v206 = vadd.f32 %v205, %v193
  %v207 = vmax.f32 %v204, %v206
  %v208 = vmul.f32 %v111, %v187
  %v209 = vadd.f32 %v208, %v193
  %v210 = vmax.f32 %v207, %v209
  %v211 = vmax.f32 %v210, 0.0
  %213 = vrot.lane.b32.xlu0 %v211, 16
  %v214 = vpop.permute.xlu0 %213
  %v216 = vsel %vm112, %v202, %v214
  %218 = vrot.lane.b32.xlu0 %v216, 127
  %v219 = vpop.permute.xlu0 %218
  %221 = vrot.lane.b32.xlu0 %v216, 1
  %v222 = vpop.permute.xlu0 %221
  %224 = vrot.lane.b32.xlu0 %v216, 3
  %v225 = vpop.permute.xlu0 %224
  %vm227 = vcmask 7168
  %v228 = vsel %vm227, %v219, %v222
  %vm229 = vcmask 138240
  %v230 = vsel %vm229, %v228, %v225
  %231 = vrot.lane.b32.xlu0 %v216, 111
  %v232 = vpop.permute.xlu0 %231
  %234 = vrot.lane.b32.xlu0 %v216, 113
  %v235 = vpop.permute.xlu0 %234
  %237 = vrot.lane.b32.xlu0 %v216, 115
  %v238 = vpop.permute.xlu0 %237
  %v240 = vsel %vm227, %v232, %v235
  %v241 = vsel %vm229, %v240, %v238
  %243 = vrot.lane.b32.xlu0 %v241, 16
  %v244 = vpop.permute.xlu0 %243
  %v246 = vsel %vm112, %v230, %v244
  %248 = vrot.lane.b32.xlu0 %v230, 127
  %v249 = vpop.permute.xlu0 %248
  %251 = vrot.lane.b32.xlu0 %v241, 15
  %v252 = vpop.permute.xlu0 %251
  %v254 = vsel %vm112, %v249, %v252
  %255 = vrot.lane.b32.xlu0 %v230, 126
  %v256 = vpop.permute.xlu0 %255
  %258 = vrot.lane.b32.xlu0 %v241, 14
  %v259 = vpop.permute.xlu0 %258
  %v261 = vsel %vm112, %v256, %v259
  %262 = vrot.lane.b32.xlu0 %v15, 125
  %v263 = vpop.permute.xlu0 %262
  %vm264 = vcmask 195584
  %v265 = vsel %vm264, %v263, 0
  %267 = vmatprep.subr.mxu0 0.0
  %268 = vmatpush1.msra.mxu0 0.0
  %269 = vmatprep.subr.mxu0 0.0
  %270 = vmatpush1.msra.mxu0 0.0
  %271 = vmatprep.subr.mxu0 0.0
  %272 = vmatpush1.msra.mxu0 0.0
  %273 = vmatprep.subr.mxu0 0.0
  %274 = vmatpush1.msra.mxu0 0.0
  %275 = vmatprep.subr.mxu0 0.0
  %276 = vmatpush1.msra.mxu0 0.0
  %277 = vmatprep.subr.mxu0 0.0
  %278 = vmatpush1.msra.mxu0 0.0
  %279 = vmatprep.subr.mxu0 0.0
  %280 = vmatpush1.msra.mxu0 0.0
  %281 = vmatprep.subr.mxu0 0.0
  %282 = vmatpush1.msra.mxu0 0.0
  %283 = vmatprep.subr.mxu0 0.0
  %284 = vmatpush1.msra.mxu0 0.0
  %285 = vmatprep.subr.mxu0 0.0
  %286 = vmatpush1.msra.mxu0 0.0
  %287 = vmatprep.subr.mxu0 0.0
  %288 = vmatpush1.msra.mxu0 0.0
  %289 = vmatprep.subr.mxu0 0.0
  %290 = vmatpush1.msra.mxu0 0.0
  %291 = vmatprep.subr.mxu0 0.0
  %292 = vmatpush1.msra.mxu0 0.0
  %293 = vmatprep.subr.mxu0 0.0
  %294 = vmatpush1.msra.mxu0 %v261
  %295 = vmatprep.subr.mxu0 0.0
  %296 = vmatpush1.msra.mxu0 %v254
  %297 = vmatprep.subr.mxu0 0.0
  %298 = vmatpush1.msra.mxu0 %v246
  %299 = vmatprep.subr.mxu0 0.0
  %300 = vmatpush2.msra.mxu0 0.0
  %301 = vmatprep.subr.mxu0 0.0
  %302 = vmatpush2.msra.mxu0 0.0
  %303 = vmatprep.subr.mxu0 0.0
  %304 = vmatpush2.msra.mxu0 0.0
  %305 = vmatprep.subr.mxu0 0.0
  %306 = vmatpush2.msra.mxu0 0.0
  %307 = vmatprep.subr.mxu0 0.0
  %308 = vmatpush2.msra.mxu0 0.0
  %309 = vmatprep.subr.mxu0 0.0
  %310 = vmatpush2.msra.mxu0 0.0
  %311 = vmatprep.subr.mxu0 0.0
  %312 = vmatpush2.msra.mxu0 0.0
  %313 = vmatprep.subr.mxu0 0.0
  %314 = vmatpush2.msra.mxu0 0.0
  %315 = vmatprep.subr.mxu0 0.0
  %316 = vmatpush2.msra.mxu0 0.0
  %317 = vmatprep.subr.mxu0 0.0
  %318 = vmatpush2.msra.mxu0 0.0
  %319 = vmatprep.subr.mxu0 0.0
  %320 = vmatpush2.msra.mxu0 0.0
  %321 = vmatprep.subr.mxu0 0.0
  %322 = vmatpush2.msra.mxu0 0.0
  %323 = vmatprep.subr.mxu0 0.0
  %324 = vmatpush2.msra.mxu0 0.0
  %325 = vmatprep.subr.mxu0 0.0
  %326 = vmatpush2.msra.mxu0 0.0
  %327 = vmatprep.subr.mxu0 0.0
  %328 = vmatpush2.msra.mxu0 0.0
  %329 = vmatprep.subr.mxu0 0.0
  %330 = vmatpush2.msra.mxu0 0.0
  %331 = vmatprep.mubr.f32.mxu0 0.0
  %332 = vmatmul.mubr.f32.gmra.mxu0 %v265
  %v333 = vpop.f32.mrf.mxu0
  %v334 = vadd.f32 0.0, %v333
  %v335 = vpop.f32.mrf.mxu0
  %336 = vdwg.mxu0
  %vm337 = vcmask 261120
  %v338 = vsel %vm337, %v334, 0.0
  %339 = vadd.xlane.f32.xlu0 %v338
  %v340 = vpop.xlane.xlu0 %339
  %v341 = vadd.f32 %v340, 0.0
  %v342 = vmul.f32 %v341, 0.03125
  %v343 = vsub.f32 %v334, %v342
  %v344 = vmul.f32 %v343, %v343
  %v345 = vsel %vm337, %v344, 0.0
  %346 = vadd.xlane.f32.xlu0 %v345
  %v347 = vpop.xlane.xlu0 %346
  %v348 = vadd.f32 %v347, 0.0
  %v349 = vmul.f32 %v348, 0.03125
  %v350 = vadd.f32 %v349, 1e-05
  %v351 = vrsqrt.pop %v350
  %v352 = vmul.f32 %v19, %v351
  %v353 = vmul.f32 %v342, %v352
  %355 = vrot.lane.b32.xlu0 %v353, 1
  %v356 = vpop.permute.xlu0 %355
  %v358 = vsub.f32 %v19, %v356
  %360 = vset.pattern.permute.xlu0 2
  %361 = vperm.xlu0 %360, %v352
  %v362 = vpop.permute.xlu0 %361
  %v364 = vmul.f32 %v334, %v362
  %366 = vset.pattern.permute.xlu0 3
  %367 = vperm.xlu0 %366, %v358
  %v368 = vpop.permute.xlu0 %367
  %v370 = vadd.f32 %v364, %v368
  %v371 = vmax.f32 %v370, 0.0
  %373 = vrot.lane.b32.xlu0 %v371, 127
  %v374 = vpop.permute.xlu0 %373
  %376 = vrot.lane.b32.xlu0 %v371, 1
  %v377 = vpop.permute.xlu0 %376
  %379 = vrot.lane.b32.xlu0 %v371, 3
  %v380 = vpop.permute.xlu0 %379
  %v382 = vsel %vm227, %v374, %v377
  %v383 = vsel %vm229, %v382, %v380
  %384 = vrot.lane.b32.xlu0 %v371, 111
  %v385 = vpop.permute.xlu0 %384
  %387 = vrot.lane.b32.xlu0 %v371, 113
  %v388 = vpop.permute.xlu0 %387
  %390 = vrot.lane.b32.xlu0 %v371, 115
  %v391 = vpop.permute.xlu0 %390
  %v393 = vsel %vm227, %v385, %v388
  %v394 = vsel %vm229, %v393, %v391
  %396 = vrot.lane.b32.xlu0 %v394, 16
  %v397 = vpop.permute.xlu0 %396
  %v399 = vsel %vm112, %v383, %v397
  %401 = vrot.lane.b32.xlu0 %v383, 127
  %v402 = vpop.permute.xlu0 %401
  %404 = vrot.lane.b32.xlu0 %v394, 15
  %v405 = vpop.permute.xlu0 %404
  %v407 = vsel %vm112, %v402, %v405
  %408 = vrot.lane.b32.xlu0 %v383, 126
  %v409 = vpop.permute.xlu0 %408
  %411 = vrot.lane.b32.xlu0 %v394, 14
  %v412 = vpop.permute.xlu0 %411
  %v414 = vsel %vm112, %v409, %v412
  %415 = vrot.lane.b32.xlu0 %v15, 101
  %v416 = vpop.permute.xlu0 %415
  %v417 = vsel %vm264, %v416, 0
  %419 = vmatprep.subr.mxu0 0.0
  %420 = vmatpush1.msra.mxu0 0.0
  %421 = vmatprep.subr.mxu0 0.0
  %422 = vmatpush1.msra.mxu0 0.0
  %423 = vmatprep.subr.mxu0 0.0
  %424 = vmatpush1.msra.mxu0 0.0
  %425 = vmatprep.subr.mxu0 0.0
  %426 = vmatpush1.msra.mxu0 0.0
  %427 = vmatprep.subr.mxu0 0.0
  %428 = vmatpush1.msra.mxu0 0.0
  %429 = vmatprep.subr.mxu0 0.0
  %430 = vmatpush1.msra.mxu0 0.0
  %431 = vmatprep.subr.mxu0 0.0
  %432 = vmatpush1.msra.mxu0 0.0
  %433 = vmatprep.subr.mxu0 0.0
  %434 = vmatpush1.msra.mxu0 0.0
  %435 = vmatprep.subr.mxu0 0.0
  %436 = vmatpush1.msra.mxu0 0.0
  %437 = vmatprep.subr.mxu0 0.0
  %438 = vmatpush1.msra.mxu0 0.0
  %439 = vmatprep.subr.mxu0 0.0
  %440 = vmatpush1.msra.mxu0 0.0
  %441 = vmatprep.subr.mxu0 0.0
  %442 = vmatpush1.msra.mxu0 0.0
  %443 = vmatprep.subr.mxu0 0.0
  %444 = vmatpush1.msra.mxu0 0.0
  %445 = vmatprep.subr.mxu0 0.0
  %446 = vmatpush1.msra.mxu0 %v414
  %447 = vmatprep.subr.mxu0 0.0
  %448 = vmatpush1.msra.mxu0 %v407
  %449 = vmatprep.subr.mxu0 0.0
  %450 = vmatpush1.msra.mxu0 %v399
  %451 = vmatprep.subr.mxu0 0.0
  %452 = vmatpush2.msra.mxu0 0.0
  %453 = vmatprep.subr.mxu0 0.0
  %454 = vmatpush2.msra.mxu0 0.0
  %455 = vmatprep.subr.mxu0 0.0
  %456 = vmatpush2.msra.mxu0 0.0
  %457 = vmatprep.subr.mxu0 0.0
  %458 = vmatpush2.msra.mxu0 0.0
  %459 = vmatprep.subr.mxu0 0.0
  %460 = vmatpush2.msra.mxu0 0.0
  %461 = vmatprep.subr.mxu0 0.0
  %462 = vmatpush2.msra.mxu0 0.0
  %463 = vmatprep.subr.mxu0 0.0
  %464 = vmatpush2.msra.mxu0 0.0
  %465 = vmatprep.subr.mxu0 0.0
  %466 = vmatpush2.msra.mxu0 0.0
  %467 = vmatprep.subr.mxu0 0.0
  %468 = vmatpush2.msra.mxu0 0.0
  %469 = vmatprep.subr.mxu0 0.0
  %470 = vmatpush2.msra.mxu0 0.0
  %471 = vmatprep.subr.mxu0 0.0
  %472 = vmatpush2.msra.mxu0 0.0
  %473 = vmatprep.subr.mxu0 0.0
  %474 = vmatpush2.msra.mxu0 0.0
  %475 = vmatprep.subr.mxu0 0.0
  %476 = vmatpush2.msra.mxu0 0.0
  %477 = vmatprep.subr.mxu0 0.0
  %478 = vmatpush2.msra.mxu0 0.0
  %479 = vmatprep.subr.mxu0 0.0
  %480 = vmatpush2.msra.mxu0 0.0
  %481 = vmatprep.subr.mxu0 0.0
  %482 = vmatpush2.msra.mxu0 0.0
  %483 = vmatprep.mubr.f32.mxu0 0.0
  %484 = vmatmul.mubr.f32.gmra.mxu0 %v417
  %v485 = vpop.f32.mrf.mxu0
  %v486 = vadd.f32 0.0, %v485
  %v487 = vpop.f32.mrf.mxu0
  %488 = vdwg.mxu0
  %v489 = vsel %vm337, %v486, 0.0
  %490 = vadd.xlane.f32.xlu0 %v489
  %v491 = vpop.xlane.xlu0 %490
  %v492 = vadd.f32 %v491, 0.0
  %v493 = vmul.f32 %v492, 0.03125
  %v494 = vsub.f32 %v486, %v493
  %v495 = vmul.f32 %v494, %v494
  %v496 = vsel %vm337, %v495, 0.0
  %497 = vadd.xlane.f32.xlu0 %v496
  %v498 = vpop.xlane.xlu0 %497
  %v499 = vadd.f32 %v498, 0.0
  %v500 = vmul.f32 %v499, 0.03125
  %v501 = vadd.f32 %v500, 1e-05
  %v502 = vrsqrt.pop %v501
  %v503 = vmul.f32 %v19, %v502
  %v504 = vmul.f32 %v493, %v503
  %506 = vrot.lane.b32.xlu0 %v504, 1
  %v507 = vpop.permute.xlu0 %506
  %v509 = vsub.f32 %v19, %v507
  %511 = vset.pattern.permute.xlu0 4
  %512 = vperm.xlu0 %511, %v503
  %v513 = vpop.permute.xlu0 %512
  %v515 = vmul.f32 %v486, %v513
  %517 = vset.pattern.permute.xlu0 5
  %518 = vperm.xlu0 %517, %v509
  %v519 = vpop.permute.xlu0 %518
  %v521 = vadd.f32 %v515, %v519
  %v522 = vadd.f32 %v521, %v216
  %v523 = vmax.f32 %v522, 0.0
  %525 = vrot.lane.b32.xlu0 %v15, 77
  %v526 = vpop.permute.xlu0 %525
  %527 = vrot.lane.b32.xlu0 %v17, 77
  %v528 = vpop.permute.xlu0 %527
  %vm529 = vcmask 64512
  %v530 = vsel %vm529, %v526, 0
  %v532 = vsel %vm529, %v528, 0
  %534 = vmatprep.subr.mxu0 0.0
  %535 = vmatpush1.msra.mxu0 0.0
  %536 = vmatprep.subr.mxu0 0.0
  %537 = vmatpush1.msra.mxu0 0.0
  %538 = vmatprep.subr.mxu0 0.0
  %539 = vmatpush1.msra.mxu0 0.0
  %540 = vmatprep.subr.mxu0 0.0
  %541 = vmatpush1.msra.mxu0 0.0
  %542 = vmatprep.subr.mxu0 0.0
  %543 = vmatpush1.msra.mxu0 0.0
  %544 = vmatprep.subr.mxu0 0.0
  %545 = vmatpush1.msra.mxu0 0.0
  %546 = vmatprep.subr.mxu0 0.0
  %547 = vmatpush1.msra.mxu0 0.0
  %548 = vmatprep.subr.mxu0 0.0
  %549 = vmatpush1.msra.mxu0 0.0
  %550 = vmatprep.subr.mxu0 0.0
  %551 = vmatpush1.msra.mxu0 0.0
  %552 = vmatprep.subr.mxu0 0.0
  %553 = vmatpush1.msra.mxu0 0.0
  %554 = vmatprep.subr.mxu0 0.0
  %555 = vmatpush1.msra.mxu0 0.0
  %556 = vmatprep.subr.mxu0 0.0
  %557 = vmatpush1.msra.mxu0 0.0
  %558 = vmatprep.subr.mxu0 0.0
  %559 = vmatpush1.msra.mxu0 0.0
  %560 = vmatprep.subr.mxu0 0.0
  %561 = vmatpush1.msra.mxu0 0.0
  %562 = vmatprep.subr.mxu0 0.0
  %563 = vmatpush1.msra.mxu0 0.0
  %564 = vmatprep.subr.mxu0 0.0
  %565 = vmatpush1.msra.mxu0 %v523
  %566 = vmatprep.subr.mxu0 0.0
  %567 = vmatpush2.msra.mxu0 0.0
  %568 = vmatprep.subr.mxu0 0.0
  %569 = vmatpush2.msra.mxu0 0.0
  %570 = vmatprep.subr.mxu0 0.0
  %571 = vmatpush2.msra.mxu0 0.0
  %572 = vmatprep.subr.mxu0 0.0
  %573 = vmatpush2.msra.mxu0 0.0
  %574 = vmatprep.subr.mxu0 0.0
  %575 = vmatpush2.msra.mxu0 0.0
  %576 = vmatprep.subr.mxu0 0.0
  %577 = vmatpush2.msra.mxu0 0.0
  %578 = vmatprep.subr.mxu0 0.0
  %579 = vmatpush2.msra.mxu0 0.0
  %580 = vmatprep.subr.mxu0 0.0
  %581 = vmatpush2.msra.mxu0 0.0
  %582 = vmatprep.subr.mxu0 0.0
  %583 = vmatpush2.msra.mxu0 0.0
  %584 = vmatprep.subr.mxu0 0.0
  %585 = vmatpush2.msra.mxu0 0.0
  %586 = vmatprep.subr.mxu0 0.0
  %587 = vmatpush2.msra.mxu0 0.0
  %588 = vmatprep.subr.mxu0 0.0
  %589 = vmatpush2.msra.mxu0 0.0
  %590 = vmatprep.subr.mxu0 0.0
  %591 = vmatpush2.msra.mxu0 0.0
  %592 = vmatprep.subr.mxu0 0.0
  %593 = vmatpush2.msra.mxu0 0.0
  %594 = vmatprep.subr.mxu0 0.0
  %595 = vmatpush2.msra.mxu0 0.0
  %596 = vmatprep.subr.mxu0 0.0
  %597 = vmatpush2.msra.mxu0 0.0
  %598 = vmatprep.mubr.f32.mxu0 0.0
  %599 = vmatmul.mubr.f32.gmra.mxu0 %v530
  %v600 = vpop.f32.mrf.mxu0
  %v601 = vadd.f32 0.0, %v600
  %v602 = vpop.f32.mrf.mxu0
  %603 = vmatprep.mubr.f32.mxu0 0.0
  %604 = vmatmul.mubr.f32.gmra.mxu0 %v532
  %v605 = vpop.f32.mrf.mxu0
  %v606 = vadd.f32 0.0, %v605
  %v607 = vpop.f32.mrf.mxu0
  %608 = vdwg.mxu0
  %v609 = vsel %vm337, %v601, 0.0
  %610 = vadd.xlane.f32.xlu0 %v609
  %v611 = vpop.xlane.xlu0 %610
  %v612 = vsel %vm337, %v606, 0.0
  %613 = vadd.xlane.f32.xlu0 %v612
  %v614 = vpop.xlane.xlu0 %613
  %v615 = vadd.f32 %v611, 0.0
  %v616 = vadd.f32 %v614, 0.0
  %v617 = vmul.f32 %v615, 0.03125
  %v618 = vmul.f32 %v616, 0.03125
  %v619 = vsub.f32 %v601, %v617
  %v620 = vsub.f32 %v606, %v618
  %v621 = vmul.f32 %v619, %v619
  %v622 = vmul.f32 %v620, %v620
  %v623 = vsel %vm337, %v621, 0.0
  %624 = vadd.xlane.f32.xlu0 %v623
  %v625 = vpop.xlane.xlu0 %624
  %v626 = vsel %vm337, %v622, 0.0
  %627 = vadd.xlane.f32.xlu0 %v626
  %v628 = vpop.xlane.xlu0 %627
  %v629 = vadd.f32 %v625, 0.0
  %v630 = vadd.f32 %v628, 0.0
  %v631 = vmul.f32 %v629, 0.03125
  %v632 = vmul.f32 %v630, 0.03125
  %v633 = vadd.f32 %v631, 1e-05
  %v634 = vadd.f32 %v632, 1e-05
  %v635 = vrsqrt.pop %v633
  %v636 = vrsqrt.pop %v634
  %v637 = vmul.f32 %v19, %v635
  %v638 = vmul.f32 %v20, %v636
  %v639 = vmul.f32 %v617, %v637
  %v640 = vmul.f32 %v618, %v638
  %643 = vrot.lane.b32.xlu0 %v639, 1
  %v644 = vpop.permute.xlu0 %643
  %645 = vrot.lane.b32.xlu0 %v640, 1
  %v646 = vpop.permute.xlu0 %645
  %v649 = vsub.f32 %v19, %v644
  %v650 = vsub.f32 %v20, %v646
  %652 = vset.pattern.permute.xlu0 6
  %653 = vperm.xlu0 %652, %v637
  %v654 = vpop.permute.xlu0 %653
  %657 = vset.pattern.permute.xlu0 6
  %658 = vperm.xlu0 %657, %v638
  %v659 = vpop.permute.xlu0 %658
  %v661 = vmul.f32 %v601, %v654
  %v662 = vmul.f32 %v606, %v659
  %664 = vset.pattern.permute.xlu0 7
  %665 = vperm.xlu0 %664, %v649
  %v666 = vpop.permute.xlu0 %665
  %669 = vset.pattern.permute.xlu0 7
  %670 = vperm.xlu0 %669, %v650
  %v671 = vpop.permute.xlu0 %670
  %v673 = vadd.f32 %v661, %v666
  %v674 = vadd.f32 %v662, %v671
  %677 = vrot.lane.b32.xlu0 %v673, 127
  %v678 = vpop.permute.xlu0 %677
  %679 = vrot.lane.b32.xlu0 %v674, 127
  %v680 = vpop.permute.xlu0 %679
  %683 = vrot.lane.b32.xlu0 %v673, 1
  %v684 = vpop.permute.xlu0 %683
  %685 = vrot.lane.b32.xlu0 %v674, 1
  %v686 = vpop.permute.xlu0 %685
  %689 = vrot.lane.b32.xlu0 %v673, 3
  %v690 = vpop.permute.xlu0 %689
  %691 = vrot.lane.b32.xlu0 %v674, 3
  %v692 = vpop.permute.xlu0 %691
  %v695 = vsel %vm227, %v678, %v684
  %v696 = vsel %vm227, %v680, %v686
  %v697 = vsel %vm229, %v695, %v690
  %v698 = vsel %vm229, %v696, %v692
  %699 = vrot.lane.b32.xlu0 %v673, 111
  %v700 = vpop.permute.xlu0 %699
  %701 = vrot.lane.b32.xlu0 %v674, 111
  %v702 = vpop.permute.xlu0 %701
  %705 = vrot.lane.b32.xlu0 %v673, 113
  %v706 = vpop.permute.xlu0 %705
  %707 = vrot.lane.b32.xlu0 %v674, 113
  %v708 = vpop.permute.xlu0 %707
  %711 = vrot.lane.b32.xlu0 %v673, 115
  %v712 = vpop.permute.xlu0 %711
  %713 = vrot.lane.b32.xlu0 %v674, 115
  %v714 = vpop.permute.xlu0 %713
  %v717 = vsel %vm227, %v700, %v706
  %v718 = vsel %vm227, %v702, %v708
  %v719 = vsel %vm229, %v717, %v712
  %v720 = vsel %vm229, %v718, %v714
  %723 = vrot.lane.b32.xlu0 %v719, 16
  %v724 = vpop.permute.xlu0 %723
  %725 = vrot.lane.b32.xlu0 %v720, 16
  %v726 = vpop.permute.xlu0 %725
  %v729 = vsel %vm112, %v697, %v724
  %v730 = vsel %vm112, %v698, %v726
  %733 = vrot.lane.b32.xlu0 %v697, 127
  %v734 = vpop.permute.xlu0 %733
  %735 = vrot.lane.b32.xlu0 %v698, 127
  %v736 = vpop.permute.xlu0 %735
  %739 = vrot.lane.b32.xlu0 %v719, 15
  %v740 = vpop.permute.xlu0 %739
  %741 = vrot.lane.b32.xlu0 %v720, 15
  %v742 = vpop.permute.xlu0 %741
  %v745 = vsel %vm112, %v734, %v740
  %v746 = vsel %vm112, %v736, %v742
  %747 = vrot.lane.b32.xlu0 %v697, 126
  %v748 = vpop.permute.xlu0 %747
  %749 = vrot.lane.b32.xlu0 %v698, 126
  %v750 = vpop.permute.xlu0 %749
  %753 = vrot.lane.b32.xlu0 %v719, 14
  %v754 = vpop.permute.xlu0 %753
  %755 = vrot.lane.b32.xlu0 %v720, 14
  %v756 = vpop.permute.xlu0 %755
  %v759 = vsel %vm112, %v748, %v754
  %v760 = vsel %vm112, %v750, %v756
  %761 = vrot.lane.b32.xlu0 %v15, 69
  %v762 = vpop.permute.xlu0 %761
  %763 = vrot.lane.b32.xlu0 %v17, 69
  %v764 = vpop.permute.xlu0 %763
  %vm765 = vcmask 392192
  %v766 = vsel %vm765, %v762, 0
  %v768 = vsel %vm765, %v764, 0
  %770 = vmatprep.subr.mxu0 0.0
  %771 = vmatpush1.msra.mxu0 0.0
  %772 = vmatprep.subr.mxu0 0.0
  %773 = vmatpush1.msra.mxu0 0.0
  %774 = vmatprep.subr.mxu0 0.0
  %775 = vmatpush1.msra.mxu0 0.0
  %776 = vmatprep.subr.mxu0 0.0
  %777 = vmatpush1.msra.mxu0 0.0
  %778 = vmatprep.subr.mxu0 0.0
  %779 = vmatpush1.msra.mxu0 0.0
  %780 = vmatprep.subr.mxu0 0.0
  %781 = vmatpush1.msra.mxu0 0.0
  %782 = vmatprep.subr.mxu0 0.0
  %783 = vmatpush1.msra.mxu0 0.0
  %784 = vmatprep.subr.mxu0 0.0
  %785 = vmatpush1.msra.mxu0 0.0
  %786 = vmatprep.subr.mxu0 0.0
  %787 = vmatpush1.msra.mxu0 0.0
  %788 = vmatprep.subr.mxu0 0.0
  %789 = vmatpush1.msra.mxu0 0.0
  %790 = vmatprep.subr.mxu0 0.0
  %791 = vmatpush1.msra.mxu0 %v760
  %792 = vmatprep.subr.mxu0 0.0
  %793 = vmatpush1.msra.mxu0 %v759
  %794 = vmatprep.subr.mxu0 0.0
  %795 = vmatpush1.msra.mxu0 %v746
  %796 = vmatprep.subr.mxu0 0.0
  %797 = vmatpush1.msra.mxu0 %v745
  %798 = vmatprep.subr.mxu0 0.0
  %799 = vmatpush1.msra.mxu0 %v730
  %800 = vmatprep.subr.mxu0 0.0
  %801 = vmatpush1.msra.mxu0 %v729
  %802 = vmatprep.subr.mxu0 0.0
  %803 = vmatpush2.msra.mxu0 0.0
  %804 = vmatprep.subr.mxu0 0.0
  %805 = vmatpush2.msra.mxu0 0.0
  %806 = vmatprep.subr.mxu0 0.0
  %807 = vmatpush2.msra.mxu0 0.0
  %808 = vmatprep.subr.mxu0 0.0
  %809 = vmatpush2.msra.mxu0 0.0
  %810 = vmatprep.subr.mxu0 0.0
  %811 = vmatpush2.msra.mxu0 0.0
  %812 = vmatprep.subr.mxu0 0.0
  %813 = vmatpush2.msra.mxu0 0.0
  %814 = vmatprep.subr.mxu0 0.0
  %815 = vmatpush2.msra.mxu0 0.0
  %816 = vmatprep.subr.mxu0 0.0
  %817 = vmatpush2.msra.mxu0 0.0
  %818 = vmatprep.subr.mxu0 0.0
  %819 = vmatpush2.msra.mxu0 0.0
  %820 = vmatprep.subr.mxu0 0.0
  %821 = vmatpush2.msra.mxu0 0.0
  %822 = vmatprep.subr.mxu0 0.0
  %823 = vmatpush2.msra.mxu0 0.0
  %824 = vmatprep.subr.mxu0 0.0
  %825 = vmatpush2.msra.mxu0 0.0
  %826 = vmatprep.subr.mxu0 0.0
  %827 = vmatpush2.msra.mxu0 0.0
  %828 = vmatprep.subr.mxu0 0.0
  %829 = vmatpush2.msra.mxu0 0.0
  %830 = vmatprep.subr.mxu0 0.0
  %831 = vmatpush2.msra.mxu0 0.0
  %832 = vmatprep.subr.mxu0 0.0
  %833 = vmatpush2.msra.mxu0 0.0
  %834 = vmatprep.mubr.f32.mxu0 0.0
  %835 = vmatmul.mubr.f32.gmra.mxu0 %v766
  %v836 = vpop.f32.mrf.mxu0
  %v837 = vadd.f32 0.0, %v836
  %v838 = vpop.f32.mrf.mxu0
  %839 = vmatprep.mubr.f32.mxu0 0.0
  %840 = vmatmul.mubr.f32.gmra.mxu0 %v768
  %v841 = vpop.f32.mrf.mxu0
  %v842 = vadd.f32 0.0, %v841
  %v843 = vpop.f32.mrf.mxu0
  %844 = vdwg.mxu0
  %v845 = vsel %vm337, %v837, 0.0
  %846 = vadd.xlane.f32.xlu0 %v845
  %v847 = vpop.xlane.xlu0 %846
  %v848 = vsel %vm337, %v842, 0.0
  %849 = vadd.xlane.f32.xlu0 %v848
  %v850 = vpop.xlane.xlu0 %849
  %v851 = vadd.f32 %v847, 0.0
  %v852 = vadd.f32 %v850, 0.0
  %v853 = vmul.f32 %v851, 0.03125
  %v854 = vmul.f32 %v852, 0.03125
  %v855 = vsub.f32 %v837, %v853
  %v856 = vsub.f32 %v842, %v854
  %v857 = vmul.f32 %v855, %v855
  %v858 = vmul.f32 %v856, %v856
  %v859 = vsel %vm337, %v857, 0.0
  %860 = vadd.xlane.f32.xlu0 %v859
  %v861 = vpop.xlane.xlu0 %860
  %v862 = vsel %vm337, %v858, 0.0
  %863 = vadd.xlane.f32.xlu0 %v862
  %v864 = vpop.xlane.xlu0 %863
  %v865 = vadd.f32 %v861, 0.0
  %v866 = vadd.f32 %v864, 0.0
  %v867 = vmul.f32 %v865, 0.03125
  %v868 = vmul.f32 %v866, 0.03125
  %v869 = vadd.f32 %v867, 1e-05
  %v870 = vadd.f32 %v868, 1e-05
  %v871 = vrsqrt.pop %v869
  %v872 = vrsqrt.pop %v870
  %v873 = vmul.f32 %v19, %v871
  %v874 = vmul.f32 %v20, %v872
  %v875 = vmul.f32 %v853, %v873
  %v876 = vmul.f32 %v854, %v874
  %879 = vrot.lane.b32.xlu0 %v875, 1
  %v880 = vpop.permute.xlu0 %879
  %881 = vrot.lane.b32.xlu0 %v876, 1
  %v882 = vpop.permute.xlu0 %881
  %v885 = vsub.f32 %v19, %v880
  %v886 = vsub.f32 %v20, %v882
  %888 = vset.pattern.permute.xlu0 8
  %889 = vperm.xlu0 %888, %v873
  %v890 = vpop.permute.xlu0 %889
  %893 = vset.pattern.permute.xlu0 8
  %894 = vperm.xlu0 %893, %v874
  %v895 = vpop.permute.xlu0 %894
  %v897 = vmul.f32 %v837, %v890
  %v898 = vmul.f32 %v842, %v895
  %900 = vset.pattern.permute.xlu0 9
  %901 = vperm.xlu0 %900, %v885
  %v902 = vpop.permute.xlu0 %901
  %905 = vset.pattern.permute.xlu0 9
  %906 = vperm.xlu0 %905, %v886
  %v907 = vpop.permute.xlu0 %906
  %v909 = vadd.f32 %v897, %v902
  %v910 = vadd.f32 %v898, %v907
  %v911 = vmax.f32 %v909, 0.0
  %v912 = vmax.f32 %v910, 0.0
  %915 = vrot.lane.b32.xlu0 %v911, 127
  %v916 = vpop.permute.xlu0 %915
  %917 = vrot.lane.b32.xlu0 %v912, 127
  %v918 = vpop.permute.xlu0 %917
  %921 = vrot.lane.b32.xlu0 %v911, 1
  %v922 = vpop.permute.xlu0 %921
  %923 = vrot.lane.b32.xlu0 %v912, 1
  %v924 = vpop.permute.xlu0 %923
  %927 = vrot.lane.b32.xlu0 %v911, 3
  %v928 = vpop.permute.xlu0 %927
  %929 = vrot.lane.b32.xlu0 %v912, 3
  %v930 = vpop.permute.xlu0 %929
  %v933 = vsel %vm227, %v916, %v922
  %v934 = vsel %vm227, %v918, %v924
  %v935 = vsel %vm229, %v933, %v928
  %v936 = vsel %vm229, %v934, %v930
  %937 = vrot.lane.b32.xlu0 %v911, 111
  %v938 = vpop.permute.xlu0 %937
  %939 = vrot.lane.b32.xlu0 %v912, 111
  %v940 = vpop.permute.xlu0 %939
  %943 = vrot.lane.b32.xlu0 %v911, 113
  %v944 = vpop.permute.xlu0 %943
  %945 = vrot.lane.b32.xlu0 %v912, 113
  %v946 = vpop.permute.xlu0 %945
  %949 = vrot.lane.b32.xlu0 %v911, 115
  %v950 = vpop.permute.xlu0 %949
  %951 = vrot.lane.b32.xlu0 %v912, 115
  %v952 = vpop.permute.xlu0 %951
  %v955 = vsel %vm227, %v938, %v944
  %v956 = vsel %vm227, %v940, %v946
  %v957 = vsel %vm229, %v955, %v950
  %v958 = vsel %vm229, %v956, %v952
  %961 = vrot.lane.b32.xlu0 %v957, 16
  %v962 = vpop.permute.xlu0 %961
  %963 = vrot.lane.b32.xlu0 %v958, 16
  %v964 = vpop.permute.xlu0 %963
  %v967 = vsel %vm112, %v935, %v962
  %v968 = vsel %vm112, %v936, %v964
  %971 = vrot.lane.b32.xlu0 %v935, 127
  %v972 = vpop.permute.xlu0 %971
  %973 = vrot.lane.b32.xlu0 %v936, 127
  %v974 = vpop.permute.xlu0 %973
  %977 = vrot.lane.b32.xlu0 %v957, 15
  %v978 = vpop.permute.xlu0 %977
  %979 = vrot.lane.b32.xlu0 %v958, 15
  %v980 = vpop.permute.xlu0 %979
  %v983 = vsel %vm112, %v972, %v978
  %v984 = vsel %vm112, %v974, %v980
  %985 = vrot.lane.b32.xlu0 %v935, 126
  %v986 = vpop.permute.xlu0 %985
  %987 = vrot.lane.b32.xlu0 %v936, 126
  %v988 = vpop.permute.xlu0 %987
  %991 = vrot.lane.b32.xlu0 %v957, 14
  %v992 = vpop.permute.xlu0 %991
  %993 = vrot.lane.b32.xlu0 %v958, 14
  %v994 = vpop.permute.xlu0 %993
  %v997 = vsel %vm112, %v986, %v992
  %v998 = vsel %vm112, %v988, %v994
  %1001 = vrot.lane.b32.xlu0 %v15, 21
  %v1002 = vpop.permute.xlu0 %1001
  %1003 = vrot.lane.b32.xlu0 %v16, 21
  %v1004 = vpop.permute.xlu0 %1003
  %1005 = vrot.lane.b32.xlu0 %v17, 21
  %v1006 = vpop.permute.xlu0 %1005
  %1007 = vrot.lane.b32.xlu0 %v18, 21
  %v1008 = vpop.permute.xlu0 %1007
  %vm1009 = vcmask 171008
  %v1010 = vsel %vm1009, %v1002, %v1004
  %v1011 = vsel %vm1009, %v1006, %v1008
  %v1012 = vsel %vm765, %v1010, 0
  %v1014 = vsel %vm765, %v1011, 0
  %1016 = vmatprep.subr.mxu0 0.0
  %1017 = vmatpush1.msra.mxu0 0.0
  %1018 = vmatprep.subr.mxu0 0.0
  %1019 = vmatpush1.msra.mxu0 0.0
  %1020 = vmatprep.subr.mxu0 0.0
  %1021 = vmatpush1.msra.mxu0 0.0
  %1022 = vmatprep.subr.mxu0 0.0
  %1023 = vmatpush1.msra.mxu0 0.0
  %1024 = vmatprep.subr.mxu0 0.0
  %1025 = vmatpush1.msra.mxu0 0.0
  %1026 = vmatprep.subr.mxu0 0.0
  %1027 = vmatpush1.msra.mxu0 0.0
  %1028 = vmatprep.subr.mxu0 0.0
  %1029 = vmatpush1.msra.mxu0 0.0
  %1030 = vmatprep.subr.mxu0 0.0
  %1031 = vmatpush1.msra.mxu0 0.0
  %1032 = vmatprep.subr.mxu0 0.0
  %1033 = vmatpush1.msra.mxu0 0.0
  %1034 = vmatprep.subr.mxu0 0.0
  %1035 = vmatpush1.msra.mxu0 0.0
  %1036 = vmatprep.subr.mxu0 0.0
  %1037 = vmatpush1.msra.mxu0 %v998
  %1038 = vmatprep.subr.mxu0 0.0
  %1039 = vmatpush1.msra.mxu0 %v997
  %1040 = vmatprep.subr.mxu0 0.0
  %1041 = vmatpush1.msra.mxu0 %v984
  %1042 = vmatprep.subr.mxu0 0.0
  %1043 = vmatpush1.msra.mxu0 %v983
  %1044 = vmatprep.subr.mxu0 0.0
  %1045 = vmatpush1.msra.mxu0 %v968
  %1046 = vmatprep.subr.mxu0 0.0
  %1047 = vmatpush1.msra.mxu0 %v967
  %1048 = vmatprep.subr.mxu0 0.0
  %1049 = vmatpush2.msra.mxu0 0.0
  %1050 = vmatprep.subr.mxu0 0.0
  %1051 = vmatpush2.msra.mxu0 0.0
  %1052 = vmatprep.subr.mxu0 0.0
  %1053 = vmatpush2.msra.mxu0 0.0
  %1054 = vmatprep.subr.mxu0 0.0
  %1055 = vmatpush2.msra.mxu0 0.0
  %1056 = vmatprep.subr.mxu0 0.0
  %1057 = vmatpush2.msra.mxu0 0.0
  %1058 = vmatprep.subr.mxu0 0.0
  %1059 = vmatpush2.msra.mxu0 0.0
  %1060 = vmatprep.subr.mxu0 0.0
  %1061 = vmatpush2.msra.mxu0 0.0
  %1062 = vmatprep.subr.mxu0 0.0
  %1063 = vmatpush2.msra.mxu0 0.0
  %1064 = vmatprep.subr.mxu0 0.0
  %1065 = vmatpush2.msra.mxu0 0.0
  %1066 = vmatprep.subr.mxu0 0.0
  %1067 = vmatpush2.msra.mxu0 0.0
  %1068 = vmatprep.subr.mxu0 0.0
  %1069 = vmatpush2.msra.mxu0 0.0
  %1070 = vmatprep.subr.mxu0 0.0
  %1071 = vmatpush2.msra.mxu0 0.0
  %1072 = vmatprep.subr.mxu0 0.0
  %1073 = vmatpush2.msra.mxu0 0.0
  %1074 = vmatprep.subr.mxu0 0.0
  %1075 = vmatpush2.msra.mxu0 0.0
  %1076 = vmatprep.subr.mxu0 0.0
  %1077 = vmatpush2.msra.mxu0 0.0
  %1078 = vmatprep.subr.mxu0 0.0
  %1079 = vmatpush2.msra.mxu0 0.0
  %1080 = vmatprep.mubr.f32.mxu0 0.0
  %1081 = vmatmul.mubr.f32.gmra.mxu0 %v1012
  %v1082 = vpop.f32.mrf.mxu0
  %v1083 = vadd.f32 0.0, %v1082
  %v1084 = vpop.f32.mrf.mxu0
  %1085 = vmatprep.mubr.f32.mxu0 0.0
  %1086 = vmatmul.mubr.f32.gmra.mxu0 %v1014
  %v1087 = vpop.f32.mrf.mxu0
  %v1088 = vadd.f32 0.0, %v1087
  %v1089 = vpop.f32.mrf.mxu0
  %1090 = vdwg.mxu0
  %v1091 = vsel %vm337, %v1083, 0.0
  %1092 = vadd.xlane.f32.xlu0 %v1091
  %v1093 = vpop.xlane.xlu0 %1092
  %v1094 = vsel %vm337, %v1088, 0.0
  %1095 = vadd.xlane.f32.xlu0 %v1094
  %v1096 = vpop.xlane.xlu0 %1095
  %v1097 = vadd.f32 %v1093, 0.0
  %v1098 = vadd.f32 %v1096, 0.0
  %v1099 = vmul.f32 %v1097, 0.03125
  %v1100 = vmul.f32 %v1098, 0.03125
  %v1101 = vsub.f32 %v1083, %v1099
  %v1102 = vsub.f32 %v1088, %v1100
  %v1103 = vmul.f32 %v1101, %v1101
  %v1104 = vmul.f32 %v1102, %v1102
  %v1105 = vsel %vm337, %v1103, 0.0
  %1106 = vadd.xlane.f32.xlu0 %v1105
  %v1107 = vpop.xlane.xlu0 %1106
  %v1108 = vsel %vm337, %v1104, 0.0
  %1109 = vadd.xlane.f32.xlu0 %v1108
  %v1110 = vpop.xlane.xlu0 %1109
  %v1111 = vadd.f32 %v1107, 0.0
  %v1112 = vadd.f32 %v1110, 0.0
  %v1113 = vmul.f32 %v1111, 0.03125
  %v1114 = vmul.f32 %v1112, 0.03125
  %v1115 = vadd.f32 %v1113, 1e-05
  %v1116 = vadd.f32 %v1114, 1e-05
  %v1117 = vrsqrt.pop %v1115
  %v1118 = vrsqrt.pop %v1116
  %v1119 = vmul.f32 %v19, %v1117
  %v1120 = vmul.f32 %v20, %v1118
  %v1121 = vmul.f32 %v1099, %v1119
  %v1122 = vmul.f32 %v1100, %v1120
  %1125 = vrot.lane.b32.xlu0 %v1121, 1
  %v1126 = vpop.permute.xlu0 %1125
  %1127 = vrot.lane.b32.xlu0 %v1122, 1
  %v1128 = vpop.permute.xlu0 %1127
  %v1131 = vsub.f32 %v19, %v1126
  %v1132 = vsub.f32 %v20, %v1128
  %1134 = vset.pattern.permute.xlu0 10
  %1135 = vperm.xlu0 %1134, %v1119
  %v1136 = vpop.permute.xlu0 %1135
  %1139 = vset.pattern.permute.xlu0 10
  %1140 = vperm.xlu0 %1139, %v1120
  %v1141 = vpop.permute.xlu0 %1140
  %v1143 = vmul.f32 %v1083, %v1136
  %v1144 = vmul.f32 %v1088, %v1141
  %1146 = vset.pattern.permute.xlu0 11
  %1147 = vperm.xlu0 %1146, %v1131
  %v1148 = vpop.permute.xlu0 %1147
  %1151 = vset.pattern.permute.xlu0 11
  %1152 = vperm.xlu0 %1151, %v1132
  %v1153 = vpop.permute.xlu0 %1152
  %v1155 = vadd.f32 %v1143, %v1148
  %v1156 = vadd.f32 %v1144, %v1153
  %v1157 = vadd.f32 %v1155, %v673
  %v1158 = vadd.f32 %v1156, %v674
  %v1159 = vmax.f32 %v1157, 0.0
  %v1160 = vmax.f32 %v1158, 0.0
  %v1161 = vsel %vm112, %v1159, 0.0
  %1162 = vadd.xlane.f32.xlu0 %v1161
  %v1163 = vpop.xlane.xlu0 %1162
  %v1164 = vsel %vm112, %v1160, 0.0
  %1165 = vadd.xlane.f32.xlu0 %v1164
  %v1166 = vpop.xlane.xlu0 %1165
  %v1167 = vrcp.pop 16.0
  %v1168 = vmul.f32 %v1163, %v1167
  %v1169 = vmul.f32 %v1166, %v1167
  %1172 = vrot.lane.b32.xlu0 %v1159, 112
  %v1173 = vpop.permute.xlu0 %1172
  %1174 = vrot.lane.b32.xlu0 %v1160, 112
  %v1175 = vpop.permute.xlu0 %1174
  %v1178 = vsel %vm112, %v1173, 0.0
  %1179 = vadd.xlane.f32.xlu0 %v1178
  %v1180 = vpop.xlane.xlu0 %1179
  %v1181 = vsel %vm112, %v1175, 0.0
  %1182 = vadd.xlane.f32.xlu0 %v1181
  %v1183 = vpop.xlane.xlu0 %1182
  %v1184 = vmul.f32 %v1180, %v1167
  %v1185 = vmul.f32 %v1183, %v1167
  %v1186 = vsel %vm227, %v1168, %v1184
  %v1187 = vsel %vm227, %v1169, %v1185
  %1189 = vset.pattern.permute.xlu0 12
  %1190 = vperm.xlu0 %1189, %v19
  %v1191 = vpop.permute.xlu0 %1190
  %1193 = vrot.lane.b32.xlu0 %v16, 101
  %v1194 = vpop.permute.xlu0 %1193
  %v1195 = vsel %vm112, %v1194, 0
  %1197 = vmatprep.subr.mxu0 0.0
  %1198 = vmatpush1.msra.mxu0 0.0
  %1199 = vmatprep.subr.mxu0 0.0
  %1200 = vmatpush1.msra.mxu0 0.0
  %1201 = vmatprep.subr.mxu0 0.0
  %1202 = vmatpush1.msra.mxu0 0.0
  %1203 = vmatprep.subr.mxu0 0.0
  %1204 = vmatpush1.msra.mxu0 0.0
  %1205 = vmatprep.subr.mxu0 0.0
  %1206 = vmatpush1.msra.mxu0 0.0
  %1207 = vmatprep.subr.mxu0 0.0
  %1208 = vmatpush1.msra.mxu0 0.0
  %1209 = vmatprep.subr.mxu0 0.0
  %1210 = vmatpush1.msra.mxu0 0.0
  %1211 = vmatprep.subr.mxu0 0.0
  %1212 = vmatpush1.msra.mxu0 0.0
  %1213 = vmatprep.subr.mxu0 0.0
  %1214 = vmatpush1.msra.mxu0 0.0
  %1215 = vmatprep.subr.mxu0 0.0
  %1216 = vmatpush1.msra.mxu0 0.0
  %1217 = vmatprep.subr.mxu0 0.0
  %1218 = vmatpush1.msra.mxu0 0.0
  %1219 = vmatprep.subr.mxu0 0.0
  %1220 = vmatpush1.msra.mxu0 0.0
  %1221 = vmatprep.subr.mxu0 0.0
  %1222 = vmatpush1.msra.mxu0 0.0
  %1223 = vmatprep.subr.mxu0 0.0
  %1224 = vmatpush1.msra.mxu0 0.0
  %1225 = vmatprep.subr.mxu0 0.0
  %1226 = vmatpush1.msra.mxu0 %v1187
  %1227 = vmatprep.subr.mxu0 0.0
  %1228 = vmatpush1.msra.mxu0 %v1186
  %1229 = vmatprep.subr.mxu0 0.0
  %1230 = vmatpush2.msra.mxu0 0.0
  %1231 = vmatprep.subr.mxu0 0.0
  %1232 = vmatpush2.msra.mxu0 0.0
  %1233 = vmatprep.subr.mxu0 0.0
  %1234 = vmatpush2.msra.mxu0 0.0
  %1235 = vmatprep.subr.mxu0 0.0
  %1236 = vmatpush2.msra.mxu0 0.0
  %1237 = vmatprep.subr.mxu0 0.0
  %1238 = vmatpush2.msra.mxu0 0.0
  %1239 = vmatprep.subr.mxu0 0.0
  %1240 = vmatpush2.msra.mxu0 0.0
  %1241 = vmatprep.subr.mxu0 0.0
  %1242 = vmatpush2.msra.mxu0 0.0
  %1243 = vmatprep.subr.mxu0 0.0
  %1244 = vmatpush2.msra.mxu0 0.0
  %1245 = vmatprep.subr.mxu0 0.0
  %1246 = vmatpush2.msra.mxu0 0.0
  %1247 = vmatprep.subr.mxu0 0.0
  %1248 = vmatpush2.msra.mxu0 0.0
  %1249 = vmatprep.subr.mxu0 0.0
  %1250 = vmatpush2.msra.mxu0 0.0
  %1251 = vmatprep.subr.mxu0 0.0
  %1252 = vmatpush2.msra.mxu0 0.0
  %1253 = vmatprep.subr.mxu0 0.0
  %1254 = vmatpush2.msra.mxu0 0.0
  %1255 = vmatprep.subr.mxu0 0.0
  %1256 = vmatpush2.msra.mxu0 0.0
  %1257 = vmatprep.subr.mxu0 0.0
  %1258 = vmatpush2.msra.mxu0 0.0
  %1259 = vmatprep.subr.mxu0 0.0
  %1260 = vmatpush2.msra.mxu0 0.0
  %1261 = vmatprep.mubr.f32.mxu0 0.0
  %1262 = vmatmul.mubr.f32.gmra.mxu0 %v1195
  %v1263 = vpop.f32.mrf.mxu0
  %v1264 = vadd.f32 %v1191, %v1263
  %v1265 = vpop.f32.mrf.mxu0
  %1266 = vdwg.mxu0
  %vm1267 = vcmask 9216
  %1268 = vst.msk [vmem:[%s3] sm:$0x3] %vm1267, %v1264
  // Predicated region
  $region14: #{_lambda_.1} parent=0 // pred_check
    _
  $region15: #{_lambda_.1} parent=0 // pred_check_branch
    %1270 = sbr.rel (0) target = $region17
  $region16: #{_lambda_.1} parent=0 // pred_region
    _
  $region17: #{_lambda_.1} parent=0 // pred_fallthru
    _
  // Predicated region
  $region18: #{_lambda_.1} parent=0 // pred_check
    _
  $region19: #{_lambda_.1} parent=0 // pred_check_branch
    %1272 = sbr.rel (0) target = $region21
  $region20: #{_lambda_.1} parent=0 // pred_region
    _
  $region21: #{_lambda_.1} parent=0 // pred_fallthru
    _

</llo_original>
